<compile_context>
chip_gen: v5e
topology: v5e:2x2
jax: 0.10.0
libtpu: 0.0.40
codegen_flags: <defaults>
</compile_context>

<pallas_src>
import functools

import jax
import jax.numpy as jnp
from jax.experimental import pallas as pl
from jax.experimental.pallas import tpu as pltpu

# ----------------------------- model config (small, synthetic) ---------------
VOCAB_SIZE = 128
HIDDEN = 64
NUM_LAYERS = 2
NUM_HEADS = 2
HEAD_DIM = HIDDEN // NUM_HEADS
INTERMEDIATE = 128
MAX_POS = 16
TYPE_VOCAB = 2
LN_EPS = 1e-12


# ----------------------------- in-kernel helpers ------------------------------
def _layernorm(x, g, b):
    """LayerNorm over the last axis, f32 math."""
    mu = jnp.mean(x, axis=-1, keepdims=True)
    xc = x - mu
    var = jnp.mean(xc * xc, axis=-1, keepdims=True)
    return (xc * jax.lax.rsqrt(var + LN_EPS)) * g + b


def _mm(x16, w_ref):
    """MXU matmul: bf16 activation x bf16 weight ref, f32 accumulation."""
    return jnp.dot(x16, w_ref[...], preferred_element_type=jnp.float32)


# ----------------------------- per-layer fused kernel -------------------------
def _bert_layer_kernel(ids_ref,
                       word_ref, pos_ref, mask_ref, emb_g_ref, emb_b_ref,
                       qkv_w_ref, qkv_b_ref, o_w_ref, o_b_ref,
                       ln1_g_ref, ln1_b_ref, i_w_ref, i_b_ref,
                       f_w_ref, f_b_ref, ln2_g_ref, ln2_b_ref,
                       pool_w_ref, pool_b_ref,
                       out_ref, x_ref,
                       *, B, S, nH, dH, L):
    H = nH * dH
    l = pl.program_id(0)

    # ---- first grid step only: embedding gather + sum + LayerNorm ------------
    @pl.when(l == 0)
    def _():
        for i in range(B * S):                      # static unroll, one-time cost
            tok = ids_ref[i]                        # scalar from SMEM (prefetched)
            x_ref[pl.ds(i, 1), :] = word_ref[pl.ds(tok, 1), :]
        pos = jnp.concatenate([pos_ref[...]] * B, axis=0)            # (B*S, H)
        x_ref[...] = _layernorm(x_ref[...] + pos, emb_g_ref[...], emb_b_ref[...])

    x = x_ref[...]                                                    # (B*S, H) f32
    x16 = x.astype(jnp.bfloat16)                                      # cast once

    # ---- self-attention: fused QKV projection -------------------------------
    qkv = _mm(x16, qkv_w_ref) + qkv_b_ref[...]                        # (B*S, 3H) f32
    scale = 1.0 / (dH ** 0.5)
    q16 = (qkv[:, 0:H] * scale).astype(jnp.bfloat16)
    k16 = qkv[:, H:2 * H].astype(jnp.bfloat16)
    v16 = qkv[:, 2 * H:3 * H].astype(jnp.bfloat16)
    amask = ((1.0 - mask_ref[...]) * -10000.0)[:, None, :]            # (B, 1, S)

    heads = []                                                        # stay in registers
    for h in range(nH):
        # Reshapes below only split/merge the leading (row) dim -> no relayout.
        qh = q16[:, h * dH:(h + 1) * dH].reshape(B, S, dH)
        kh = k16[:, h * dH:(h + 1) * dH].reshape(B, S, dH)
        vh = v16[:, h * dH:(h + 1) * dH].reshape(B, S, dH)
        s = jnp.einsum('bqd,bkd->bqk', qh, kh,
                       preferred_element_type=jnp.float32) + amask    # (B, S, S)
        s = s - jnp.max(s, axis=-1, keepdims=True)
        p = jnp.exp(s)
        p = p * pl.reciprocal(jnp.sum(p, axis=-1, keepdims=True), approx=True)
        hd = jnp.einsum('bqk,bkd->bqd', p.astype(jnp.bfloat16), vh,
                        preferred_element_type=jnp.float32)           # (B, S, dH)
        heads.append(hd.reshape(B * S, dH))
    ctx16 = jnp.concatenate(heads, axis=-1).astype(jnp.bfloat16)      # (B*S, H)

    # ---- attention output projection + residual + LN ----
    attn = _mm(ctx16, o_w_ref) + o_b_ref[...]
    x = _layernorm(attn + x, ln1_g_ref[...], ln1_b_ref[...])
    x16 = x.astype(jnp.bfloat16)

    # ---- feed-forward ----
    # TODO(synk): HF BERT uses exact (erf) GELU; tanh approximation kept for
    # robust Mosaic lowering (numerically very close).
    hmid = jax.nn.gelu(_mm(x16, i_w_ref) + i_b_ref[...], approximate=True)
    ffn = _mm(hmid.astype(jnp.bfloat16), f_w_ref) + f_b_ref[...]
    x = _layernorm(ffn + x, ln2_g_ref[...], ln2_b_ref[...])
    x_ref[...] = x                                                    # carry to next layer

    # ---- last layer only: CLS rows + pooler (tanh(cls @ Wp + bp)) -----------
    @pl.when(l == L - 1)
    def _():
        cls = x.reshape(B, S, H)[:, 0, :]                             # (B, H)
        pooled = jnp.tanh(_mm(cls.astype(jnp.bfloat16), pool_w_ref) + pool_b_ref[...])
        out_ref[...] = pooled.astype(out_ref.dtype)


# ----------------------------- parameter init (deterministic) ----------------
def _dense(key, fan_in, fan_out):
    w = 0.02 * jax.random.normal(key, (fan_in, fan_out), jnp.float32)
    b = jnp.zeros((1, fan_out), jnp.float32)
    return w, b


def init_params(key):
    keys = jax.random.split(key, 4 + NUM_LAYERS)
    params = {
        "word_emb": 0.02 * jax.random.normal(keys[0], (VOCAB_SIZE, HIDDEN), jnp.float32),
        "pos_emb": 0.02 * jax.random.normal(keys[1], (MAX_POS, HIDDEN), jnp.float32),
        "type_emb": 0.02 * jax.random.normal(keys[2], (TYPE_VOCAB, HIDDEN), jnp.float32),
        "emb_ln_g": jnp.ones((1, HIDDEN), jnp.float32),
        "emb_ln_b": jnp.zeros((1, HIDDEN), jnp.float32),
    }
    params["pool_w"], params["pool_b"] = _dense(keys[3], HIDDEN, HIDDEN)

    qkv_w, qkv_b, o_w, o_b, i_w, i_b, f_w, f_b = ([] for _ in range(8))
    for l in range(NUM_LAYERS):
        lk = jax.random.split(keys[4 + l], 6)
        qw, qb = _dense(lk[0], HIDDEN, HIDDEN)
        kw, kb = _dense(lk[1], HIDDEN, HIDDEN)
        vw, vb = _dense(lk[2], HIDDEN, HIDDEN)
        ow, ob = _dense(lk[3], HIDDEN, HIDDEN)
        iw, ib = _dense(lk[4], HIDDEN, INTERMEDIATE)
        fw, fb = _dense(lk[5], INTERMEDIATE, HIDDEN)
        qkv_w.append(jnp.concatenate([qw, kw, vw], axis=1))           # (H, 3H)
        qkv_b.append(jnp.concatenate([qb, kb, vb], axis=1))           # (1, 3H)
        o_w.append(ow); o_b.append(ob)
        i_w.append(iw); i_b.append(ib)
        f_w.append(fw); f_b.append(fb)

    params.update(
        qkv_w=jnp.stack(qkv_w), qkv_b=jnp.stack(qkv_b),               # (L, H, 3H), (L, 1, 3H)
        o_w=jnp.stack(o_w), o_b=jnp.stack(o_b),                       # (L, H, H), (L, 1, H)
        i_w=jnp.stack(i_w), i_b=jnp.stack(i_b),                       # (L, H, I), (L, 1, I)
        f_w=jnp.stack(f_w), f_b=jnp.stack(f_b),                       # (L, I, H), (L, 1, H)
        attn_ln_g=jnp.ones((NUM_LAYERS, 1, HIDDEN), jnp.float32),
        attn_ln_b=jnp.zeros((NUM_LAYERS, 1, HIDDEN), jnp.float32),
        ffn_ln_g=jnp.ones((NUM_LAYERS, 1, HIDDEN), jnp.float32),
        ffn_ln_b=jnp.zeros((NUM_LAYERS, 1, HIDDEN), jnp.float32),
    )
    return params


# ----------------------------- forward pass -----------------------------------
def bert_forward(params, input_ids, attention_mask):
    """Returns pooler_output, matching BertModelSimplifiedWrapper.forward."""
    B, S = input_ids.shape
    H, L = HIDDEN, NUM_LAYERS

    ids = input_ids.reshape(B * S).astype(jnp.int32)                  # scalar-prefetch arg
    mask = attention_mask.astype(jnp.float32)
    # token_type_ids default to zeros in the wrapped HF call -> fold type row 0 into pos.
    pos_type = params["pos_emb"][:S] + params["type_emb"][0][None, :]  # (S, H)

    bf16 = lambda a: a.astype(jnp.bfloat16)                            # MXU inputs only

    kernel = functools.partial(_bert_layer_kernel,
                               B=B, S=S, nH=NUM_HEADS, dH=HEAD_DIM, L=L)

    def full(shape):     # layer-invariant operand, resident across the L grid
        return pl.BlockSpec(shape, lambda l, ids_ref: (0,) * len(shape))

    def per_layer(shape):  # stacked (L, ...) operand, streamed per layer
        return pl.BlockSpec((None,) + shape,
                            lambda l, ids_ref: (l,) + (0,) * len(shape))

    grid_spec = pltpu.PrefetchScalarGridSpec(
        num_scalar_prefetch=1,
        grid=(L,),
        in_specs=[
            full((VOCAB_SIZE, H)),                     # word embedding table
            full((S, H)),                              # pos (+type) embedding
            full((B, S)),                              # attention mask
            full((1, H)), full((1, H)),                # embedding LN g/b
            per_layer((H, 3 * H)), per_layer((1, 3 * H)),            # fused QKV
            per_layer((H, H)), per_layer((1, H)),                    # attn out proj
            per_layer((1, H)), per_layer((1, H)),                    # attn LN g/b
            per_layer((H, INTERMEDIATE)), per_layer((1, INTERMEDIATE)),  # FFN in
            per_layer((INTERMEDIATE, H)), per_layer((1, H)),         # FFN out
            per_layer((1, H)), per_layer((1, H)),                    # FFN LN g/b
            full((H, H)), full((1, H)),                              # pooler
        ],
        out_specs=pl.BlockSpec((B, H), lambda l, ids_ref: (0, 0)),
        scratch_shapes=[pltpu.VMEM((B * S, H), jnp.float32)],          # hidden-state carry
    )

    return pl.pallas_call(
        kernel,
        out_shape=jax.ShapeDtypeStruct((B, H), jnp.float32),
        grid_spec=grid_spec,
        compiler_params=pltpu.CompilerParams(
            dimension_semantics=("arbitrary",),        # layer axis is sequential
            vmem_limit_bytes=16 * 1024 * 1024,
        ),
    )(
        ids,
        params["word_emb"], pos_type, mask,
        params["emb_ln_g"], params["emb_ln_b"],
        bf16(params["qkv_w"]), params["qkv_b"],
        bf16(params["o_w"]), params["o_b"],
        params["attn_ln_g"], params["attn_ln_b"],
        bf16(params["i_w"]), params["i_b"],
        bf16(params["f_w"]), params["f_b"],
        params["ffn_ln_g"], params["ffn_ln_b"],
        bf16(params["pool_w"]), params["pool_b"],
    )


# ----------------------------- main -------------------------------------------
if __name__ == "__main__":
    key = jax.random.PRNGKey(0)
    pkey, ikey = jax.random.split(key)

    params = init_params(pkey)

    B, S = 2, 8
    input_ids = jax.random.randint(ikey, (B, S), 0, VOCAB_SIZE, dtype=jnp.int32)
    attention_mask = jnp.array(
        [[1, 1, 1, 1, 1, 1, 1, 1],
         [1, 1, 1, 1, 1, 1, 0, 0]], dtype=jnp.int32)

    pooled = jax.jit(bert_forward)(params, input_ids, attention_mask)
    pooled = jax.block_until_ready(pooled)

    assert pooled.shape == (B, HIDDEN)
    assert bool(jnp.all(jnp.isfinite(pooled)))
    print("KERNEL_OK")
</pallas_src>

<mosaic_0001>
module attributes {stable_mosaic.version = 11 : i64} {
  func.func @_bert_layer_kernel(%arg0: i32, %arg1: memref<16xi32, #tpu.memory_space<smem>>, %arg2: memref<128x64xf32, #tpu.memory_space<vmem>>, %arg3: memref<8x64xf32, #tpu.memory_space<vmem>>, %arg4: memref<2x8xf32, #tpu.memory_space<vmem>>, %arg5: memref<1x64xf32, #tpu.memory_space<vmem>>, %arg6: memref<1x64xf32, #tpu.memory_space<vmem>>, %arg7: memref<1x64x192xbf16, #tpu.memory_space<vmem>>, %arg8: memref<1x1x192xf32, #tpu.memory_space<vmem>>, %arg9: memref<1x64x64xbf16, #tpu.memory_space<vmem>>, %arg10: memref<1x1x64xf32, #tpu.memory_space<vmem>>, %arg11: memref<1x1x64xf32, #tpu.memory_space<vmem>>, %arg12: memref<1x1x64xf32, #tpu.memory_space<vmem>>, %arg13: memref<1x64x128xbf16, #tpu.memory_space<vmem>>, %arg14: memref<1x1x128xf32, #tpu.memory_space<vmem>>, %arg15: memref<1x128x64xbf16, #tpu.memory_space<vmem>>, %arg16: memref<1x1x64xf32, #tpu.memory_space<vmem>>, %arg17: memref<1x1x64xf32, #tpu.memory_space<vmem>>, %arg18: memref<1x1x64xf32, #tpu.memory_space<vmem>>, %arg19: memref<64x64xbf16, #tpu.memory_space<vmem>>, %arg20: memref<1x64xf32, #tpu.memory_space<vmem>>, %arg21: memref<2x64xf32, #tpu.memory_space<vmem>>, %arg22: memref<16x64xf32, #tpu.memory_space<vmem>>) attributes {dimension_semantics = [#tpu.dimension_semantics<arbitrary>], iteration_bounds = array<i64: 2>, scalar_prefetch = 1 : i64, scratch_operands = 1 : i64, tpu.core_type = #tpu.core_type<tc>, window_params = [{pipeline_mode = #tpu.pipeline_mode<synchronous>, transform_indices = @transform_0, window_bounds = array<i64: 128, 64>}, {pipeline_mode = #tpu.pipeline_mode<synchronous>, transform_indices = @transform_1, window_bounds = array<i64: 8, 64>}, {pipeline_mode = #tpu.pipeline_mode<synchronous>, transform_indices = @transform_2, window_bounds = array<i64: 2, 8>}, {pipeline_mode = #tpu.pipeline_mode<synchronous>, transform_indices = @transform_3, window_bounds = array<i64: 1, 64>}, {pipeline_mode = #tpu.pipeline_mode<synchronous>, transform_indices = @transform_4, window_bounds = array<i64: 1, 64>}, {transform_indices = @transform_5, window_bounds = array<i64: 1, 64, 192>}, {transform_indices = @transform_6, window_bounds = array<i64: 1, 1, 192>}, {transform_indices = @transform_7, window_bounds = array<i64: 1, 64, 64>}, {transform_indices = @transform_8, window_bounds = array<i64: 1, 1, 64>}, {transform_indices = @transform_9, window_bounds = array<i64: 1, 1, 64>}, {transform_indices = @transform_10, window_bounds = array<i64: 1, 1, 64>}, {transform_indices = @transform_11, window_bounds = array<i64: 1, 64, 128>}, {transform_indices = @transform_12, window_bounds = array<i64: 1, 1, 128>}, {transform_indices = @transform_13, window_bounds = array<i64: 1, 128, 64>}, {transform_indices = @transform_14, window_bounds = array<i64: 1, 1, 64>}, {transform_indices = @transform_15, window_bounds = array<i64: 1, 1, 64>}, {transform_indices = @transform_16, window_bounds = array<i64: 1, 1, 64>}, {pipeline_mode = #tpu.pipeline_mode<synchronous>, transform_indices = @transform_17, window_bounds = array<i64: 64, 64>}, {pipeline_mode = #tpu.pipeline_mode<synchronous>, transform_indices = @transform_18, window_bounds = array<i64: 1, 64>}, {pipeline_mode = #tpu.pipeline_mode<synchronous>, transform_indices = @transform_19, window_bounds = array<i64: 2, 64>}]} {
    %c0_i32 = arith.constant 0 : i32
    %0 = arith.cmpi eq, %arg0, %c0_i32 : i32
    %1 = arith.extui %0 : i1 to i32
    %c0_i32_0 = arith.constant 0 : i32
    %2 = arith.cmpi ne, %1, %c0_i32_0 : i32
    scf.if %2 {
      %c0_71 = arith.constant 0 : index
      %162 = memref.load %arg1[%c0_71] : memref<16xi32, #tpu.memory_space<smem>>
      %163 = arith.index_cast %162 : i32 to index
      %c0_72 = arith.constant 0 : index
      %164 = vector.load %arg2[%163, %c0_72] : memref<128x64xf32, #tpu.memory_space<vmem>>, vector<1x64xf32>
      %c0_73 = arith.constant 0 : index
      %c0_74 = arith.constant 0 : index
      %165 = vector.load %arg22[%c0_73, %c0_74] : memref<16x64xf32, #tpu.memory_space<vmem>>, vector<1x64xf32>
      tpu.vector_store %arg22[%c0_73, %c0_74], %164 {strides = array<i32>} : memref<16x64xf32, #tpu.memory_space<vmem>>, vector<1x64xf32>,
      %c1 = arith.constant 1 : index
      %166 = memref.load %arg1[%c1] : memref<16xi32, #tpu.memory_space<smem>>
      %167 = arith.index_cast %166 : i32 to index
      %c0_75 = arith.constant 0 : index
      %168 = vector.load %arg2[%167, %c0_75] : memref<128x64xf32, #tpu.memory_space<vmem>>, vector<1x64xf32>
      %c1_76 = arith.constant 1 : index
      %c0_77 = arith.constant 0 : index
      %169 = vector.load %arg22[%c1_76, %c0_77] : memref<16x64xf32, #tpu.memory_space<vmem>>, vector<1x64xf32>
      tpu.vector_store %arg22[%c1_76, %c0_77], %168 {strides = array<i32>} : memref<16x64xf32, #tpu.memory_space<vmem>>, vector<1x64xf32>,
      %c2 = arith.constant 2 : index
      %170 = memref.load %arg1[%c2] : memref<16xi32, #tpu.memory_space<smem>>
      %171 = arith.index_cast %170 : i32 to index
      %c0_78 = arith.constant 0 : index
      %172 = vector.load %arg2[%171, %c0_78] : memref<128x64xf32, #tpu.memory_space<vmem>>, vector<1x64xf32>
      %c2_79 = arith.constant 2 : index
      %c0_80 = arith.constant 0 : index
      %173 = vector.load %arg22[%c2_79, %c0_80] : memref<16x64xf32, #tpu.memory_space<vmem>>, vector<1x64xf32>
      tpu.vector_store %arg22[%c2_79, %c0_80], %172 {strides = array<i32>} : memref<16x64xf32, #tpu.memory_space<vmem>>, vector<1x64xf32>,
      %c3 = arith.constant 3 : index
      %174 = memref.load %arg1[%c3] : memref<16xi32, #tpu.memory_space<smem>>
      %175 = arith.index_cast %174 : i32 to index
      %c0_81 = arith.constant 0 : index
      %176 = vector.load %arg2[%175, %c0_81] : memref<128x64xf32, #tpu.memory_space<vmem>>, vector<1x64xf32>
      %c3_82 = arith.constant 3 : index
      %c0_83 = arith.constant 0 : index
      %177 = vector.load %arg22[%c3_82, %c0_83] : memref<16x64xf32, #tpu.memory_space<vmem>>, vector<1x64xf32>
      tpu.vector_store %arg22[%c3_82, %c0_83], %176 {strides = array<i32>} : memref<16x64xf32, #tpu.memory_space<vmem>>, vector<1x64xf32>,
      %c4 = arith.constant 4 : index
      %178 = memref.load %arg1[%c4] : memref<16xi32, #tpu.memory_space<smem>>
      %179 = arith.index_cast %178 : i32 to index
      %c0_84 = arith.constant 0 : index
      %180 = vector.load %arg2[%179, %c0_84] : memref<128x64xf32, #tpu.memory_space<vmem>>, vector<1x64xf32>
      %c4_85 = arith.constant 4 : index
      %c0_86 = arith.constant 0 : index
      %181 = vector.load %arg22[%c4_85, %c0_86] : memref<16x64xf32, #tpu.memory_space<vmem>>, vector<1x64xf32>
      tpu.vector_store %arg22[%c4_85, %c0_86], %180 {strides = array<i32>} : memref<16x64xf32, #tpu.memory_space<vmem>>, vector<1x64xf32>,
      %c5 = arith.constant 5 : index
      %182 = memref.load %arg1[%c5] : memref<16xi32, #tpu.memory_space<smem>>
      %183 = arith.index_cast %182 : i32 to index
      %c0_87 = arith.constant 0 : index
      %184 = vector.load %arg2[%183, %c0_87] : memref<128x64xf32, #tpu.memory_space<vmem>>, vector<1x64xf32>
      %c5_88 = arith.constant 5 : index
      %c0_89 = arith.constant 0 : index
      %185 = vector.load %arg22[%c5_88, %c0_89] : memref<16x64xf32, #tpu.memory_space<vmem>>, vector<1x64xf32>
      tpu.vector_store %arg22[%c5_88, %c0_89], %184 {strides = array<i32>} : memref<16x64xf32, #tpu.memory_space<vmem>>, vector<1x64xf32>,
      %c6 = arith.constant 6 : index
      %186 = memref.load %arg1[%c6] : memref<16xi32, #tpu.memory_space<smem>>
      %187 = arith.index_cast %186 : i32 to index
      %c0_90 = arith.constant 0 : index
      %188 = vector.load %arg2[%187, %c0_90] : memref<128x64xf32, #tpu.memory_space<vmem>>, vector<1x64xf32>
      %c6_91 = arith.constant 6 : index
      %c0_92 = arith.constant 0 : index
      %189 = vector.load %arg22[%c6_91, %c0_92] : memref<16x64xf32, #tpu.memory_space<vmem>>, vector<1x64xf32>
      tpu.vector_store %arg22[%c6_91, %c0_92], %188 {strides = array<i32>} : memref<16x64xf32, #tpu.memory_space<vmem>>, vector<1x64xf32>,
      %c7 = arith.constant 7 : index
      %190 = memref.load %arg1[%c7] : memref<16xi32, #tpu.memory_space<smem>>
      %191 = arith.index_cast %190 : i32 to index
      %c0_93 = arith.constant 0 : index
      %192 = vector.load %arg2[%191, %c0_93] : memref<128x64xf32, #tpu.memory_space<vmem>>, vector<1x64xf32>
      %c7_94 = arith.constant 7 : index
      %c0_95 = arith.constant 0 : index
      %193 = vector.load %arg22[%c7_94, %c0_95] : memref<16x64xf32, #tpu.memory_space<vmem>>, vector<1x64xf32>
      tpu.vector_store %arg22[%c7_94, %c0_95], %192 {strides = array<i32>} : memref<16x64xf32, #tpu.memory_space<vmem>>, vector<1x64xf32>,
      %c8 = arith.constant 8 : index
      %194 = memref.load %arg1[%c8] : memref<16xi32, #tpu.memory_space<smem>>
      %195 = arith.index_cast %194 : i32 to index
      %c0_96 = arith.constant 0 : index
      %196 = vector.load %arg2[%195, %c0_96] : memref<128x64xf32, #tpu.memory_space<vmem>>, vector<1x64xf32>
      %c8_97 = arith.constant 8 : index
      %c0_98 = arith.constant 0 : index
      %197 = vector.load %arg22[%c8_97, %c0_98] : memref<16x64xf32, #tpu.memory_space<vmem>>, vector<1x64xf32>
      tpu.vector_store %arg22[%c8_97, %c0_98], %196 {strides = array<i32>} : memref<16x64xf32, #tpu.memory_space<vmem>>, vector<1x64xf32>,
      %c9 = arith.constant 9 : index
      %198 = memref.load %arg1[%c9] : memref<16xi32, #tpu.memory_space<smem>>
      %199 = arith.index_cast %198 : i32 to index
      %c0_99 = arith.constant 0 : index
      %200 = vector.load %arg2[%199, %c0_99] : memref<128x64xf32, #tpu.memory_space<vmem>>, vector<1x64xf32>
      %c9_100 = arith.constant 9 : index
      %c0_101 = arith.constant 0 : index
      %201 = vector.load %arg22[%c9_100, %c0_101] : memref<16x64xf32, #tpu.memory_space<vmem>>, vector<1x64xf32>
      tpu.vector_store %arg22[%c9_100, %c0_101], %200 {strides = array<i32>} : memref<16x64xf32, #tpu.memory_space<vmem>>, vector<1x64xf32>,
      %c10 = arith.constant 10 : index
      %202 = memref.load %arg1[%c10] : memref<16xi32, #tpu.memory_space<smem>>
      %203 = arith.index_cast %202 : i32 to index
      %c0_102 = arith.constant 0 : index
      %204 = vector.load %arg2[%203, %c0_102] : memref<128x64xf32, #tpu.memory_space<vmem>>, vector<1x64xf32>
      %c10_103 = arith.constant 10 : index
      %c0_104 = arith.constant 0 : index
      %205 = vector.load %arg22[%c10_103, %c0_104] : memref<16x64xf32, #tpu.memory_space<vmem>>, vector<1x64xf32>
      tpu.vector_store %arg22[%c10_103, %c0_104], %204 {strides = array<i32>} : memref<16x64xf32, #tpu.memory_space<vmem>>, vector<1x64xf32>,
      %c11 = arith.constant 11 : index
      %206 = memref.load %arg1[%c11] : memref<16xi32, #tpu.memory_space<smem>>
      %207 = arith.index_cast %206 : i32 to index
      %c0_105 = arith.constant 0 : index
      %208 = vector.load %arg2[%207, %c0_105] : memref<128x64xf32, #tpu.memory_space<vmem>>, vector<1x64xf32>
      %c11_106 = arith.constant 11 : index
      %c0_107 = arith.constant 0 : index
      %209 = vector.load %arg22[%c11_106, %c0_107] : memref<16x64xf32, #tpu.memory_space<vmem>>, vector<1x64xf32>
      tpu.vector_store %arg22[%c11_106, %c0_107], %208 {strides = array<i32>} : memref<16x64xf32, #tpu.memory_space<vmem>>, vector<1x64xf32>,
      %c12 = arith.constant 12 : index
      %210 = memref.load %arg1[%c12] : memref<16xi32, #tpu.memory_space<smem>>
      %211 = arith.index_cast %210 : i32 to index
      %c0_108 = arith.constant 0 : index
      %212 = vector.load %arg2[%211, %c0_108] : memref<128x64xf32, #tpu.memory_space<vmem>>, vector<1x64xf32>
      %c12_109 = arith.constant 12 : index
      %c0_110 = arith.constant 0 : index
      %213 = vector.load %arg22[%c12_109, %c0_110] : memref<16x64xf32, #tpu.memory_space<vmem>>, vector<1x64xf32>
      tpu.vector_store %arg22[%c12_109, %c0_110], %212 {strides = array<i32>} : memref<16x64xf32, #tpu.memory_space<vmem>>, vector<1x64xf32>,
      %c13 = arith.constant 13 : index
      %214 = memref.load %arg1[%c13] : memref<16xi32, #tpu.memory_space<smem>>
      %215 = arith.index_cast %214 : i32 to index
      %c0_111 = arith.constant 0 : index
      %216 = vector.load %arg2[%215, %c0_111] : memref<128x64xf32, #tpu.memory_space<vmem>>, vector<1x64xf32>
      %c13_112 = arith.constant 13 : index
      %c0_113 = arith.constant 0 : index
      %217 = vector.load %arg22[%c13_112, %c0_113] : memref<16x64xf32, #tpu.memory_space<vmem>>, vector<1x64xf32>
      tpu.vector_store %arg22[%c13_112, %c0_113], %216 {strides = array<i32>} : memref<16x64xf32, #tpu.memory_space<vmem>>, vector<1x64xf32>,
      %c14 = arith.constant 14 : index
      %218 = memref.load %arg1[%c14] : memref<16xi32, #tpu.memory_space<smem>>
      %219 = arith.index_cast %218 : i32 to index
      %c0_114 = arith.constant 0 : index
      %220 = vector.load %arg2[%219, %c0_114] : memref<128x64xf32, #tpu.memory_space<vmem>>, vector<1x64xf32>
      %c14_115 = arith.constant 14 : index
      %c0_116 = arith.constant 0 : index
      %221 = vector.load %arg22[%c14_115, %c0_116] : memref<16x64xf32, #tpu.memory_space<vmem>>, vector<1x64xf32>
      tpu.vector_store %arg22[%c14_115, %c0_116], %220 {strides = array<i32>} : memref<16x64xf32, #tpu.memory_space<vmem>>, vector<1x64xf32>,
      %c15 = arith.constant 15 : index
      %222 = memref.load %arg1[%c15] : memref<16xi32, #tpu.memory_space<smem>>
      %223 = arith.index_cast %222 : i32 to index
      %c0_117 = arith.constant 0 : index
      %224 = vector.load %arg2[%223, %c0_117] : memref<128x64xf32, #tpu.memory_space<vmem>>, vector<1x64xf32>
      %c15_118 = arith.constant 15 : index
      %c0_119 = arith.constant 0 : index
      %225 = vector.load %arg22[%c15_118, %c0_119] : memref<16x64xf32, #tpu.memory_space<vmem>>, vector<1x64xf32>
      tpu.vector_store %arg22[%c15_118, %c0_119], %224 {strides = array<i32>} : memref<16x64xf32, #tpu.memory_space<vmem>>, vector<1x64xf32>,
      %c0_120 = arith.constant 0 : index
      %c0_121 = arith.constant 0 : index
      %226 = vector.load %arg3[%c0_120, %c0_121] : memref<8x64xf32, #tpu.memory_space<vmem>>, vector<8x64xf32>
      %227 = tpu.concatenate %226, %226 in 0 : vector<8x64xf32>, vector<8x64xf32> -> vector<16x64xf32>
      %c0_122 = arith.constant 0 : index
      %c0_123 = arith.constant 0 : index
      %228 = vector.load %arg22[%c0_122, %c0_123] : memref<16x64xf32, #tpu.memory_space<vmem>>, vector<16x64xf32>
      %229 = arith.addf %228, %227 : vector<16x64xf32>
      %c0_124 = arith.constant 0 : index
      %c0_125 = arith.constant 0 : index
      %230 = vector.load %arg5[%c0_124, %c0_125] : memref<1x64xf32, #tpu.memory_space<vmem>>, vector<1x64xf32>
      %c0_126 = arith.constant 0 : index
      %c0_127 = arith.constant 0 : index
      %231 = vector.load %arg6[%c0_126, %c0_127] : memref<1x64xf32, #tpu.memory_space<vmem>>, vector<1x64xf32>
      %cst_128 = arith.constant dense<0.000000e+00> : vector<16xf32>
      %232 = vector.multi_reduction <add>, %229, %cst_128 [1] : vector<16x64xf32> to vector<16xf32>
      %233 = vector.shape_cast %232 : vector<16xf32> to vector<16x1xf32>
      %cst_129 = arith.constant 6.400000e+01 : f32
      %234 = vector.broadcast %cst_129 : f32 to vector<16x1xf32>
      %235 = arith.divf %233, %234 : vector<16x1xf32>
      %236 = vector.broadcast %235 : vector<16x1xf32> to vector<16x64xf32>
      %237 = arith.subf %229, %236 : vector<16x64xf32>
      %238 = arith.mulf %237, %237 : vector<16x64xf32>
      %cst_130 = arith.constant dense<0.000000e+00> : vector<16xf32>
      %239 = vector.multi_reduction <add>, %238, %cst_130 [1] : vector<16x64xf32> to vector<16xf32>
      %240 = vector.shape_cast %239 : vector<16xf32> to vector<16x1xf32>
      %cst_131 = arith.constant 6.400000e+01 : f32
      %241 = vector.broadcast %cst_131 : f32 to vector<16x1xf32>
      %242 = arith.divf %240, %241 : vector<16x1xf32>
      %cst_132 = arith.constant 9.99999996E-13 : f32
      %243 = vector.broadcast %cst_132 : f32 to vector<16x1xf32>
      %244 = arith.addf %242, %243 : vector<16x1xf32>
      %245 = math.rsqrt %244 : vector<16x1xf32>
      %246 = vector.broadcast %245 : vector<16x1xf32> to vector<16x64xf32>
      %247 = arith.mulf %237, %246 : vector<16x64xf32>
      %248 = vector.broadcast %230 : vector<1x64xf32> to vector<16x64xf32>
      %249 = arith.mulf %247, %248 : vector<16x64xf32>
      %250 = vector.broadcast %231 : vector<1x64xf32> to vector<16x64xf32>
      %251 = arith.addf %249, %250 : vector<16x64xf32>
      %c0_133 = arith.constant 0 : index
      %c0_134 = arith.constant 0 : index
      %252 = vector.load %arg22[%c0_133, %c0_134] : memref<16x64xf32, #tpu.memory_space<vmem>>, vector<16x64xf32>
      tpu.vector_store %arg22[%c0_133, %c0_134], %251 {strides = array<i32>} : memref<16x64xf32, #tpu.memory_space<vmem>>, vector<16x64xf32>,
    } else {
    }
    %c0 = arith.constant 0 : index
    %c0_1 = arith.constant 0 : index
    %3 = vector.load %arg22[%c0, %c0_1] : memref<16x64xf32, #tpu.memory_space<vmem>>, vector<16x64xf32>
    %4 = arith.truncf %3 : vector<16x64xf32> to vector<16x64xbf16>
    %c0_2 = arith.constant 0 : index
    %c0_3 = arith.constant 0 : index
    %c0_4 = arith.constant 0 : index
    %5 = vector.load %arg7[%c0_2, %c0_3, %c0_4] : memref<1x64x192xbf16, #tpu.memory_space<vmem>>, vector<1x64x192xbf16>
    %6 = vector.shape_cast %5 : vector<1x64x192xbf16> to vector<64x192xbf16>
    %cst = arith.constant dense<0.000000e+00> : vector<16x192xf32>
    %7 = tpu.matmul %4, %6, %cst {dimension_numbers = #tpu.dot_dimension_numbers<[1], [0], [0], [1], [0, 0, 1, 1], [], []>} : vector<16x64xbf16>, vector<64x192xbf16>, vector<16x192xf32> -> vector<16x192xf32>
    %c0_5 = arith.constant 0 : index
    %c0_6 = arith.constant 0 : index
    %c0_7 = arith.constant 0 : index
    %8 = vector.load %arg8[%c0_5, %c0_6, %c0_7] : memref<1x1x192xf32, #tpu.memory_space<vmem>>, vector<1x1x192xf32>
    %9 = vector.shape_cast %8 : vector<1x1x192xf32> to vector<1x192xf32>
    %10 = vector.broadcast %9 : vector<1x192xf32> to vector<16x192xf32>
    %11 = arith.addf %7, %10 : vector<16x192xf32>
    %12 = vector.extract_strided_slice %11 {offsets = [0, 0], sizes = [16, 64], strides = [1, 1]} : vector<16x192xf32> to vector<16x64xf32>
    %cst_8 = arith.constant 0.176776692 : f32
    %13 = vector.broadcast %cst_8 : f32 to vector<16x64xf32>
    %14 = arith.mulf %12, %13 : vector<16x64xf32>
    %15 = arith.truncf %14 : vector<16x64xf32> to vector<16x64xbf16>
    %16 = vector.extract_strided_slice %11 {offsets = [0, 64], sizes = [16, 64], strides = [1, 1]} : vector<16x192xf32> to vector<16x64xf32>
    %17 = arith.truncf %16 : vector<16x64xf32> to vector<16x64xbf16>
    %18 = vector.extract_strided_slice %11 {offsets = [0, 128], sizes = [16, 64], strides = [1, 1]} : vector<16x192xf32> to vector<16x64xf32>
    %19 = arith.truncf %18 : vector<16x64xf32> to vector<16x64xbf16>
    %c0_9 = arith.constant 0 : index
    %c0_10 = arith.constant 0 : index
    %20 = vector.load %arg4[%c0_9, %c0_10] : memref<2x8xf32, #tpu.memory_space<vmem>>, vector<2x8xf32>
    %cst_11 = arith.constant 1.000000e+00 : f32
    %21 = vector.broadcast %cst_11 : f32 to vector<2x8xf32>
    %22 = arith.subf %21, %20 : vector<2x8xf32>
    %cst_12 = arith.constant -1.000000e+04 : f32
    %23 = vector.broadcast %cst_12 : f32 to vector<2x8xf32>
    %24 = arith.mulf %22, %23 : vector<2x8xf32>
    %25 = vector.shape_cast %24 : vector<2x8xf32> to vector<2x1x8xf32>
    %26 = vector.extract_strided_slice %15 {offsets = [0, 0], sizes = [16, 32], strides = [1, 1]} : vector<16x64xbf16> to vector<16x32xbf16>
    %27 = vector.shape_cast %26 : vector<16x32xbf16> to vector<2x8x32xbf16>
    %28 = vector.extract_strided_slice %17 {offsets = [0, 0], sizes = [16, 32], strides = [1, 1]} : vector<16x64xbf16> to vector<16x32xbf16>
    %29 = vector.shape_cast %28 : vector<16x32xbf16> to vector<2x8x32xbf16>
    %30 = vector.extract_strided_slice %19 {offsets = [0, 0], sizes = [16, 32], strides = [1, 1]} : vector<16x64xbf16> to vector<16x32xbf16>
    %31 = vector.shape_cast %30 : vector<16x32xbf16> to vector<2x8x32xbf16>
    "tpu.trace_start"() <{level = 10 : i32, message = "bqd,bkd->bqk"}> : () -> ()
    %cst_13 = arith.constant dense<0.000000e+00> : vector<2x8x8xf32>
    %32 = tpu.matmul %27, %29, %cst_13 {dimension_numbers = #tpu.dot_dimension_numbers<[2], [2], [1], [1], [0, 0, 0, 1, 1, 1], [0], [0]>} : vector<2x8x32xbf16>, vector<2x8x32xbf16>, vector<2x8x8xf32> -> vector<2x8x8xf32>
    "tpu.trace_stop"() : () -> ()
    %33 = vector.broadcast %25 : vector<2x1x8xf32> to vector<2x8x8xf32>
    %34 = arith.addf %32, %33 : vector<2x8x8xf32>
    %cst_14 = arith.constant dense<0xFF800000> : vector<2x8xf32>
    %35 = vector.multi_reduction <maximumf>, %34, %cst_14 [2] : vector<2x8x8xf32> to vector<2x8xf32>
    %36 = vector.shape_cast %35 : vector<2x8xf32> to vector<2x8x1xf32>
    %37 = vector.broadcast %36 : vector<2x8x1xf32> to vector<2x8x8xf32>
    %38 = arith.subf %34, %37 : vector<2x8x8xf32>
    %39 = math.exp %38 : vector<2x8x8xf32>
    %cst_15 = arith.constant dense<0.000000e+00> : vector<2x8xf32>
    %40 = vector.multi_reduction <add>, %39, %cst_15 [2] : vector<2x8x8xf32> to vector<2x8xf32>
    %41 = vector.shape_cast %40 : vector<2x8xf32> to vector<2x8x1xf32>
    %42 = tpu.reciprocal %41 {approx = true} : vector<2x8x1xf32> -> vector<2x8x1xf32>
    %43 = vector.broadcast %42 : vector<2x8x1xf32> to vector<2x8x8xf32>
    %44 = arith.mulf %39, %43 : vector<2x8x8xf32>
    %45 = arith.truncf %44 : vector<2x8x8xf32> to vector<2x8x8xbf16>
    "tpu.trace_start"() <{level = 10 : i32, message = "bqk,bkd->bqd"}> : () -> ()
    %cst_16 = arith.constant dense<0.000000e+00> : vector<2x8x32xf32>
    %46 = tpu.matmul %45, %31, %cst_16 {dimension_numbers = #tpu.dot_dimension_numbers<[2], [1], [1], [2], [0, 0, 0, 1, 1, 2], [0], [0]>} : vector<2x8x8xbf16>, vector<2x8x32xbf16>, vector<2x8x32xf32> -> vector<2x8x32xf32>
    "tpu.trace_stop"() : () -> ()
    %47 = vector.shape_cast %46 : vector<2x8x32xf32> to vector<16x32xf32>
    %48 = vector.extract_strided_slice %15 {offsets = [0, 32], sizes = [16, 32], strides = [1, 1]} : vector<16x64xbf16> to vector<16x32xbf16>
    %49 = vector.shape_cast %48 : vector<16x32xbf16> to vector<2x8x32xbf16>
    %50 = vector.extract_strided_slice %17 {offsets = [0, 32], sizes = [16, 32], strides = [1, 1]} : vector<16x64xbf16> to vector<16x32xbf16>
    %51 = vector.shape_cast %50 : vector<16x32xbf16> to vector<2x8x32xbf16>
    %52 = vector.extract_strided_slice %19 {offsets = [0, 32], sizes = [16, 32], strides = [1, 1]} : vector<16x64xbf16> to vector<16x32xbf16>
    %53 = vector.shape_cast %52 : vector<16x32xbf16> to vector<2x8x32xbf16>
    "tpu.trace_start"() <{level = 10 : i32, message = "bqd,bkd->bqk"}> : () -> ()
    %cst_17 = arith.constant dense<0.000000e+00> : vector<2x8x8xf32>
    %54 = tpu.matmul %49, %51, %cst_17 {dimension_numbers = #tpu.dot_dimension_numbers<[2], [2], [1], [1], [0, 0, 0, 1, 1, 1], [0], [0]>} : vector<2x8x32xbf16>, vector<2x8x32xbf16>, vector<2x8x8xf32> -> vector<2x8x8xf32>
    "tpu.trace_stop"() : () -> ()
    %55 = vector.broadcast %25 : vector<2x1x8xf32> to vector<2x8x8xf32>
    %56 = arith.addf %54, %55 : vector<2x8x8xf32>
    %cst_18 = arith.constant dense<0xFF800000> : vector<2x8xf32>
    %57 = vector.multi_reduction <maximumf>, %56, %cst_18 [2] : vector<2x8x8xf32> to vector<2x8xf32>
    %58 = vector.shape_cast %57 : vector<2x8xf32> to vector<2x8x1xf32>
    %59 = vector.broadcast %58 : vector<2x8x1xf32> to vector<2x8x8xf32>
    %60 = arith.subf %56, %59 : vector<2x8x8xf32>
    %61 = math.exp %60 : vector<2x8x8xf32>
    %cst_19 = arith.constant dense<0.000000e+00> : vector<2x8xf32>
    %62 = vector.multi_reduction <add>, %61, %cst_19 [2] : vector<2x8x8xf32> to vector<2x8xf32>
    %63 = vector.shape_cast %62 : vector<2x8xf32> to vector<2x8x1xf32>
    %64 = tpu.reciprocal %63 {approx = true} : vector<2x8x1xf32> -> vector<2x8x1xf32>
    %65 = vector.broadcast %64 : vector<2x8x1xf32> to vector<2x8x8xf32>
    %66 = arith.mulf %61, %65 : vector<2x8x8xf32>
    %67 = arith.truncf %66 : vector<2x8x8xf32> to vector<2x8x8xbf16>
    "tpu.trace_start"() <{level = 10 : i32, message = "bqk,bkd->bqd"}> : () -> ()
    %cst_20 = arith.constant dense<0.000000e+00> : vector<2x8x32xf32>
    %68 = tpu.matmul %67, %53, %cst_20 {dimension_numbers = #tpu.dot_dimension_numbers<[2], [1], [1], [2], [0, 0, 0, 1, 1, 2], [0], [0]>} : vector<2x8x8xbf16>, vector<2x8x32xbf16>, vector<2x8x32xf32> -> vector<2x8x32xf32>
    "tpu.trace_stop"() : () -> ()
    %69 = vector.shape_cast %68 : vector<2x8x32xf32> to vector<16x32xf32>
    %70 = tpu.concatenate %47, %69 in 1 : vector<16x32xf32>, vector<16x32xf32> -> vector<16x64xf32>
    %71 = arith.truncf %70 : vector<16x64xf32> to vector<16x64xbf16>
    %c0_21 = arith.constant 0 : index
    %c0_22 = arith.constant 0 : index
    %c0_23 = arith.constant 0 : index
    %72 = vector.load %arg9[%c0_21, %c0_22, %c0_23] : memref<1x64x64xbf16, #tpu.memory_space<vmem>>, vector<1x64x64xbf16>
    %73 = vector.shape_cast %72 : vector<1x64x64xbf16> to vector<64x64xbf16>
    %cst_24 = arith.constant dense<0.000000e+00> : vector<16x64xf32>
    %74 = tpu.matmul %71, %73, %cst_24 {dimension_numbers = #tpu.dot_dimension_numbers<[1], [0], [0], [1], [0, 0, 1, 1], [], []>} : vector<16x64xbf16>, vector<64x64xbf16>, vector<16x64xf32> -> vector<16x64xf32>
    %c0_25 = arith.constant 0 : index
    %c0_26 = arith.constant 0 : index
    %c0_27 = arith.constant 0 : index
    %75 = vector.load %arg10[%c0_25, %c0_26, %c0_27] : memref<1x1x64xf32, #tpu.memory_space<vmem>>, vector<1x1x64xf32>
    %76 = vector.shape_cast %75 : vector<1x1x64xf32> to vector<1x64xf32>
    %77 = vector.broadcast %76 : vector<1x64xf32> to vector<16x64xf32>
    %78 = arith.addf %74, %77 : vector<16x64xf32>
    %79 = arith.addf %78, %3 : vector<16x64xf32>
    %c0_28 = arith.constant 0 : index
    %c0_29 = arith.constant 0 : index
    %c0_30 = arith.constant 0 : index
    %80 = vector.load %arg11[%c0_28, %c0_29, %c0_30] : memref<1x1x64xf32, #tpu.memory_space<vmem>>, vector<1x1x64xf32>
    %81 = vector.shape_cast %80 : vector<1x1x64xf32> to vector<1x64xf32>
    %c0_31 = arith.constant 0 : index
    %c0_32 = arith.constant 0 : index
    %c0_33 = arith.constant 0 : index
    %82 = vector.load %arg12[%c0_31, %c0_32, %c0_33] : memref<1x1x64xf32, #tpu.memory_space<vmem>>, vector<1x1x64xf32>
    %83 = vector.shape_cast %82 : vector<1x1x64xf32> to vector<1x64xf32>
    %cst_34 = arith.constant dense<0.000000e+00> : vector<16xf32>
    %84 = vector.multi_reduction <add>, %79, %cst_34 [1] : vector<16x64xf32> to vector<16xf32>
    %85 = vector.shape_cast %84 : vector<16xf32> to vector<16x1xf32>
    %cst_35 = arith.constant 6.400000e+01 : f32
    %86 = vector.broadcast %cst_35 : f32 to vector<16x1xf32>
    %87 = arith.divf %85, %86 : vector<16x1xf32>
    %88 = vector.broadcast %87 : vector<16x1xf32> to vector<16x64xf32>
    %89 = arith.subf %79, %88 : vector<16x64xf32>
    %90 = arith.mulf %89, %89 : vector<16x64xf32>
    %cst_36 = arith.constant dense<0.000000e+00> : vector<16xf32>
    %91 = vector.multi_reduction <add>, %90, %cst_36 [1] : vector<16x64xf32> to vector<16xf32>
    %92 = vector.shape_cast %91 : vector<16xf32> to vector<16x1xf32>
    %cst_37 = arith.constant 6.400000e+01 : f32
    %93 = vector.broadcast %cst_37 : f32 to vector<16x1xf32>
    %94 = arith.divf %92, %93 : vector<16x1xf32>
    %cst_38 = arith.constant 9.99999996E-13 : f32
    %95 = vector.broadcast %cst_38 : f32 to vector<16x1xf32>
    %96 = arith.addf %94, %95 : vector<16x1xf32>
    %97 = math.rsqrt %96 : vector<16x1xf32>
    %98 = vector.broadcast %97 : vector<16x1xf32> to vector<16x64xf32>
    %99 = arith.mulf %89, %98 : vector<16x64xf32>
    %100 = vector.broadcast %81 : vector<1x64xf32> to vector<16x64xf32>
    %101 = arith.mulf %99, %100 : vector<16x64xf32>
    %102 = vector.broadcast %83 : vector<1x64xf32> to vector<16x64xf32>
    %103 = arith.addf %101, %102 : vector<16x64xf32>
    %104 = arith.truncf %103 : vector<16x64xf32> to vector<16x64xbf16>
    %c0_39 = arith.constant 0 : index
    %c0_40 = arith.constant 0 : index
    %c0_41 = arith.constant 0 : index
    %105 = vector.load %arg13[%c0_39, %c0_40, %c0_41] : memref<1x64x128xbf16, #tpu.memory_space<vmem>>, vector<1x64x128xbf16>
    %106 = vector.shape_cast %105 : vector<1x64x128xbf16> to vector<64x128xbf16>
    %cst_42 = arith.constant dense<0.000000e+00> : vector<16x128xf32>
    %107 = tpu.matmul %104, %106, %cst_42 {dimension_numbers = #tpu.dot_dimension_numbers<[1], [0], [0], [1], [0, 0, 1, 1], [], []>} : vector<16x64xbf16>, vector<64x128xbf16>, vector<16x128xf32> -> vector<16x128xf32>
    %c0_43 = arith.constant 0 : index
    %c0_44 = arith.constant 0 : index
    %c0_45 = arith.constant 0 : index
    %108 = vector.load %arg14[%c0_43, %c0_44, %c0_45] : memref<1x1x128xf32, #tpu.memory_space<vmem>>, vector<1x1x128xf32>
    %109 = vector.shape_cast %108 : vector<1x1x128xf32> to vector<1x128xf32>
    %110 = vector.broadcast %109 : vector<1x128xf32> to vector<16x128xf32>
    %111 = arith.addf %107, %110 : vector<16x128xf32>
    %112 = arith.mulf %111, %111 : vector<16x128xf32>
    %113 = arith.mulf %111, %112 : vector<16x128xf32>
    %cst_46 = arith.constant 4.471500e-02 : f32
    %114 = vector.broadcast %cst_46 : f32 to vector<16x128xf32>
    %115 = arith.mulf %114, %113 : vector<16x128xf32>
    %116 = arith.addf %111, %115 : vector<16x128xf32>
    %cst_47 = arith.constant 0.797884583 : f32
    %117 = vector.broadcast %cst_47 : f32 to vector<16x128xf32>
    %118 = arith.mulf %117, %116 : vector<16x128xf32>
    %119 = math.tanh %118 : vector<16x128xf32>
    %cst_48 = arith.constant 1.000000e+00 : f32
    %120 = vector.broadcast %cst_48 : f32 to vector<16x128xf32>
    %121 = arith.addf %120, %119 : vector<16x128xf32>
    %cst_49 = arith.constant 5.000000e-01 : f32
    %122 = vector.broadcast %cst_49 : f32 to vector<16x128xf32>
    %123 = arith.mulf %122, %121 : vector<16x128xf32>
    %124 = arith.mulf %111, %123 : vector<16x128xf32>
    %125 = arith.truncf %124 : vector<16x128xf32> to vector<16x128xbf16>
    %c0_50 = arith.constant 0 : index
    %c0_51 = arith.constant 0 : index
    %c0_52 = arith.constant 0 : index
    %126 = vector.load %arg15[%c0_50, %c0_51, %c0_52] : memref<1x128x64xbf16, #tpu.memory_space<vmem>>, vector<1x128x64xbf16>
    %127 = vector.shape_cast %126 : vector<1x128x64xbf16> to vector<128x64xbf16>
    %cst_53 = arith.constant dense<0.000000e+00> : vector<16x64xf32>
    %128 = tpu.matmul %125, %127, %cst_53 {dimension_numbers = #tpu.dot_dimension_numbers<[1], [0], [0], [1], [0, 0, 1, 1], [], []>} : vector<16x128xbf16>, vector<128x64xbf16>, vector<16x64xf32> -> vector<16x64xf32>
    %c0_54 = arith.constant 0 : index
    %c0_55 = arith.constant 0 : index
    %c0_56 = arith.constant 0 : index
    %129 = vector.load %arg16[%c0_54, %c0_55, %c0_56] : memref<1x1x64xf32, #tpu.memory_space<vmem>>, vector<1x1x64xf32>
    %130 = vector.shape_cast %129 : vector<1x1x64xf32> to vector<1x64xf32>
    %131 = vector.broadcast %130 : vector<1x64xf32> to vector<16x64xf32>
    %132 = arith.addf %128, %131 : vector<16x64xf32>
    %133 = arith.addf %132, %103 : vector<16x64xf32>
    %c0_57 = arith.constant 0 : index
    %c0_58 = arith.constant 0 : index
    %c0_59 = arith.constant 0 : index
    %134 = vector.load %arg17[%c0_57, %c0_58, %c0_59] : memref<1x1x64xf32, #tpu.memory_space<vmem>>, vector<1x1x64xf32>
    %135 = vector.shape_cast %134 : vector<1x1x64xf32> to vector<1x64xf32>
    %c0_60 = arith.constant 0 : index
    %c0_61 = arith.constant 0 : index
    %c0_62 = arith.constant 0 : index
    %136 = vector.load %arg18[%c0_60, %c0_61, %c0_62] : memref<1x1x64xf32, #tpu.memory_space<vmem>>, vector<1x1x64xf32>
    %137 = vector.shape_cast %136 : vector<1x1x64xf32> to vector<1x64xf32>
    %cst_63 = arith.constant dense<0.000000e+00> : vector<16xf32>
    %138 = vector.multi_reduction <add>, %133, %cst_63 [1] : vector<16x64xf32> to vector<16xf32>
    %139 = vector.shape_cast %138 : vector<16xf32> to vector<16x1xf32>
    %cst_64 = arith.constant 6.400000e+01 : f32
    %140 = vector.broadcast %cst_64 : f32 to vector<16x1xf32>
    %141 = arith.divf %139, %140 : vector<16x1xf32>
    %142 = vector.broadcast %141 : vector<16x1xf32> to vector<16x64xf32>
    %143 = arith.subf %133, %142 : vector<16x64xf32>
    %144 = arith.mulf %143, %143 : vector<16x64xf32>
    %cst_65 = arith.constant dense<0.000000e+00> : vector<16xf32>
    %145 = vector.multi_reduction <add>, %144, %cst_65 [1] : vector<16x64xf32> to vector<16xf32>
    %146 = vector.shape_cast %145 : vector<16xf32> to vector<16x1xf32>
    %cst_66 = arith.constant 6.400000e+01 : f32
    %147 = vector.broadcast %cst_66 : f32 to vector<16x1xf32>
    %148 = arith.divf %146, %147 : vector<16x1xf32>
    %cst_67 = arith.constant 9.99999996E-13 : f32
    %149 = vector.broadcast %cst_67 : f32 to vector<16x1xf32>
    %150 = arith.addf %148, %149 : vector<16x1xf32>
    %151 = math.rsqrt %150 : vector<16x1xf32>
    %152 = vector.broadcast %151 : vector<16x1xf32> to vector<16x64xf32>
    %153 = arith.mulf %143, %152 : vector<16x64xf32>
    %154 = vector.broadcast %135 : vector<1x64xf32> to vector<16x64xf32>
    %155 = arith.mulf %153, %154 : vector<16x64xf32>
    %156 = vector.broadcast %137 : vector<1x64xf32> to vector<16x64xf32>
    %157 = arith.addf %155, %156 : vector<16x64xf32>
    %c0_68 = arith.constant 0 : index
    %c0_69 = arith.constant 0 : index
    %158 = vector.load %arg22[%c0_68, %c0_69] : memref<16x64xf32, #tpu.memory_space<vmem>>, vector<16x64xf32>
    tpu.vector_store %arg22[%c0_68, %c0_69], %157 {strides = array<i32>} : memref<16x64xf32, #tpu.memory_space<vmem>>, vector<16x64xf32>,
    %c1_i32 = arith.constant 1 : i32
    %159 = arith.cmpi eq, %arg0, %c1_i32 : i32
    %160 = arith.extui %159 : i1 to i32
    %c0_i32_70 = arith.constant 0 : i32
    %161 = arith.cmpi ne, %160, %c0_i32_70 : i32
    scf.if %161 {
      %162 = vector.shape_cast %157 : vector<16x64xf32> to vector<2x8x64xf32>
      %163 = vector.extract_strided_slice %162 {offsets = [0, 0, 0], sizes = [2, 1, 64], strides = [1, 1, 1]} : vector<2x8x64xf32> to vector<2x1x64xf32>
      %164 = vector.shape_cast %163 : vector<2x1x64xf32> to vector<2x64xf32>
      %165 = arith.truncf %164 : vector<2x64xf32> to vector<2x64xbf16>
      %c0_71 = arith.constant 0 : index
      %c0_72 = arith.constant 0 : index
      %166 = vector.load %arg19[%c0_71, %c0_72] : memref<64x64xbf16, #tpu.memory_space<vmem>>, vector<64x64xbf16>
      %cst_73 = arith.constant dense<0.000000e+00> : vector<2x64xf32>
      %167 = tpu.matmul %165, %166, %cst_73 {dimension_numbers = #tpu.dot_dimension_numbers<[1], [0], [0], [1], [0, 0, 1, 1], [], []>} : vector<2x64xbf16>, vector<64x64xbf16>, vector<2x64xf32> -> vector<2x64xf32>
      %c0_74 = arith.constant 0 : index
      %c0_75 = arith.constant 0 : index
      %168 = vector.load %arg20[%c0_74, %c0_75] : memref<1x64xf32, #tpu.memory_space<vmem>>, vector<1x64xf32>
      %169 = vector.broadcast %168 : vector<1x64xf32> to vector<2x64xf32>
      %170 = arith.addf %167, %169 : vector<2x64xf32>
      %171 = math.tanh %170 : vector<2x64xf32>
      %c0_76 = arith.constant 0 : index
      %c0_77 = arith.constant 0 : index
      %172 = vector.load %arg21[%c0_76, %c0_77] : memref<2x64xf32, #tpu.memory_space<vmem>>, vector<2x64xf32>
      tpu.vector_store %arg21[%c0_76, %c0_77], %171 {strides = array<i32>} : memref<2x64xf32, #tpu.memory_space<vmem>>, vector<2x64xf32>,
    } else {
    }
    return
  }
  func.func @transform_0(%arg0: i32, %arg1: memref<16xi32, #tpu.memory_space<smem>>) -> (i32, i32) {
    %c0_i32 = arith.constant 0 : i32
    %c0_i32_0 = arith.constant 0 : i32
    %c0_i32_1 = arith.constant 0 : i32
    return %c0_i32, %c0_i32_0 : i32, i32
  }
  func.func @transform_1(%arg0: i32, %arg1: memref<16xi32, #tpu.memory_space<smem>>) -> (i32, i32) {
    %c0_i32 = arith.constant 0 : i32
    %c0_i32_0 = arith.constant 0 : i32
    %c0_i32_1 = arith.constant 0 : i32
    return %c0_i32, %c0_i32_0 : i32, i32
  }
  func.func @transform_2(%arg0: i32, %arg1: memref<16xi32, #tpu.memory_space<smem>>) -> (i32, i32) {
    %c0_i32 = arith.constant 0 : i32
    %c0_i32_0 = arith.constant 0 : i32
    %c0_i32_1 = arith.constant 0 : i32
    return %c0_i32, %c0_i32_0 : i32, i32
  }
  func.func @transform_3(%arg0: i32, %arg1: memref<16xi32, #tpu.memory_space<smem>>) -> (i32, i32) {
    %c0_i32 = arith.constant 0 : i32
    %c0_i32_0 = arith.constant 0 : i32
    %c0_i32_1 = arith.constant 0 : i32
    return %c0_i32, %c0_i32_0 : i32, i32
  }
  func.func @transform_4(%arg0: i32, %arg1: memref<16xi32, #tpu.memory_space<smem>>) -> (i32, i32) {
    %c0_i32 = arith.constant 0 : i32
    %c0_i32_0 = arith.constant 0 : i32
    %c0_i32_1 = arith.constant 0 : i32
    return %c0_i32, %c0_i32_0 : i32, i32
  }
  func.func @transform_5(%arg0: i32, %arg1: memref<16xi32, #tpu.memory_space<smem>>) -> (i32, i32, i32) {
    %c0_i32 = arith.constant 0 : i32
    %c0_i32_0 = arith.constant 0 : i32
    %c0_i32_1 = arith.constant 0 : i32
    return %arg0, %c0_i32, %c0_i32_0 : i32, i32, i32
  }
  func.func @transform_6(%arg0: i32, %arg1: memref<16xi32, #tpu.memory_space<smem>>) -> (i32, i32, i32) {
    %c0_i32 = arith.constant 0 : i32
    %c0_i32_0 = arith.constant 0 : i32
    %c0_i32_1 = arith.constant 0 : i32
    return %arg0, %c0_i32, %c0_i32_0 : i32, i32, i32
  }
  func.func @transform_7(%arg0: i32, %arg1: memref<16xi32, #tpu.memory_space<smem>>) -> (i32, i32, i32) {
    %c0_i32 = arith.constant 0 : i32
    %c0_i32_0 = arith.constant 0 : i32
    %c0_i32_1 = arith.constant 0 : i32
    return %arg0, %c0_i32, %c0_i32_0 : i32, i32, i32
  }
  func.func @transform_8(%arg0: i32, %arg1: memref<16xi32, #tpu.memory_space<smem>>) -> (i32, i32, i32) {
    %c0_i32 = arith.constant 0 : i32
    %c0_i32_0 = arith.constant 0 : i32
    %c0_i32_1 = arith.constant 0 : i32
    return %arg0, %c0_i32, %c0_i32_0 : i32, i32, i32
  }
  func.func @transform_9(%arg0: i32, %arg1: memref<16xi32, #tpu.memory_space<smem>>) -> (i32, i32, i32) {
    %c0_i32 = arith.constant 0 : i32
    %c0_i32_0 = arith.constant 0 : i32
    %c0_i32_1 = arith.constant 0 : i32
    return %arg0, %c0_i32, %c0_i32_0 : i32, i32, i32
  }
  func.func @transform_10(%arg0: i32, %arg1: memref<16xi32, #tpu.memory_space<smem>>) -> (i32, i32, i32) {
    %c0_i32 = arith.constant 0 : i32
    %c0_i32_0 = arith.constant 0 : i32
    %c0_i32_1 = arith.constant 0 : i32
    return %arg0, %c0_i32, %c0_i32_0 : i32, i32, i32
  }
  func.func @transform_11(%arg0: i32, %arg1: memref<16xi32, #tpu.memory_space<smem>>) -> (i32, i32, i32) {
    %c0_i32 = arith.constant 0 : i32
    %c0_i32_0 = arith.constant 0 : i32
    %c0_i32_1 = arith.constant 0 : i32
    return %arg0, %c0_i32, %c0_i32_0 : i32, i32, i32
  }
  func.func @transform_12(%arg0: i32, %arg1: memref<16xi32, #tpu.memory_space<smem>>) -> (i32, i32, i32) {
    %c0_i32 = arith.constant 0 : i32
    %c0_i32_0 = arith.constant 0 : i32
    %c0_i32_1 = arith.constant 0 : i32
    return %arg0, %c0_i32, %c0_i32_0 : i32, i32, i32
  }
  func.func @transform_13(%arg0: i32, %arg1: memref<16xi32, #tpu.memory_space<smem>>) -> (i32, i32, i32) {
    %c0_i32 = arith.constant 0 : i32
    %c0_i32_0 = arith.constant 0 : i32
    %c0_i32_1 = arith.constant 0 : i32
    return %arg0, %c0_i32, %c0_i32_0 : i32, i32, i32
  }
  func.func @transform_14(%arg0: i32, %arg1: memref<16xi32, #tpu.memory_space<smem>>) -> (i32, i32, i32) {
    %c0_i32 = arith.constant 0 : i32
    %c0_i32_0 = arith.constant 0 : i32
    %c0_i32_1 = arith.constant 0 : i32
    return %arg0, %c0_i32, %c0_i32_0 : i32, i32, i32
  }
  func.func @transform_15(%arg0: i32, %arg1: memref<16xi32, #tpu.memory_space<smem>>) -> (i32, i32, i32) {
    %c0_i32 = arith.constant 0 : i32
    %c0_i32_0 = arith.constant 0 : i32
    %c0_i32_1 = arith.constant 0 : i32
    return %arg0, %c0_i32, %c0_i32_0 : i32, i32, i32
  }
  func.func @transform_16(%arg0: i32, %arg1: memref<16xi32, #tpu.memory_space<smem>>) -> (i32, i32, i32) {
    %c0_i32 = arith.constant 0 : i32
    %c0_i32_0 = arith.constant 0 : i32
    %c0_i32_1 = arith.constant 0 : i32
    return %arg0, %c0_i32, %c0_i32_0 : i32, i32, i32
  }
  func.func @transform_17(%arg0: i32, %arg1: memref<16xi32, #tpu.memory_space<smem>>) -> (i32, i32) {
    %c0_i32 = arith.constant 0 : i32
    %c0_i32_0 = arith.constant 0 : i32
    %c0_i32_1 = arith.constant 0 : i32
    return %c0_i32, %c0_i32_0 : i32, i32
  }
  func.func @transform_18(%arg0: i32, %arg1: memref<16xi32, #tpu.memory_space<smem>>) -> (i32, i32) {
    %c0_i32 = arith.constant 0 : i32
    %c0_i32_0 = arith.constant 0 : i32
    %c0_i32_1 = arith.constant 0 : i32
    return %c0_i32, %c0_i32_0 : i32, i32
  }
  func.func @transform_19(%arg0: i32, %arg1: memref<16xi32, #tpu.memory_space<smem>>) -> (i32, i32) {
    %c0_i32 = arith.constant 0 : i32
    %c0_i32_0 = arith.constant 0 : i32
    %c0_i32_1 = arith.constant 0 : i32
    return %c0_i32, %c0_i32_0 : i32, i32
  }
}

</mosaic_0001>

<llo_original>
// kernel: bert_forward.1
$region0: #{bert_forward.1}
  #allocation0 [shape = 'u32[]', space=smem, size = 0x4, offset = 0x4, fixed_abs, tag = 'smem constant byte address 0x4 - core index']
  #allocation1 [shape = 'u32[72,128]{1,0:T(1,128)}', space=vmem, size = 0x9000, scoped, tag = 'internal scratch']
  #allocation2 [shape = 'f32[16,64]{1,0:T(8,128)}', space=vmem, size = 0x2000, scoped, tag = 'scratch operand']
  #allocation3 [shape = 's32[1]{0}', space=sflag, size = 0x4, scoped, tag = 'scoped memory for bert_forward.1']
  #allocation4 [shape = 'u8[512]{0}', space=smem, size = 0x200, scoped, tag = 'prefetched SMEM operand 0']
  %s0 = inlined_call_operand.vmem [shape: s32[16], index: 0, kind: input, shape index: {}]
  %s1 = inlined_call_operand.vmem [shape: f32[128,64], index: 1, kind: input, shape index: {}]
  %s2 = inlined_call_operand.vmem [shape: f32[8,64], index: 2, kind: input, shape index: {}]
  %s3 = inlined_call_operand.vmem [shape: f32[2,8], index: 3, kind: input, shape index: {}]
  %s4 = inlined_call_operand.vmem [shape: f32[1,64], index: 4, kind: input, shape index: {}]
  %s5 = inlined_call_operand.vmem [shape: f32[1,64], index: 5, kind: input, shape index: {}]
  %s6 = inlined_call_operand.vmem [shape: bf16[2,64,192], index: 6, kind: input, shape index: {}]
  %s7 = inlined_call_operand.vmem [shape: f32[2,1,192], index: 7, kind: input, shape index: {}]
  %s8 = inlined_call_operand.vmem [shape: bf16[2,64,64], index: 8, kind: input, shape index: {}]
  %s9 = inlined_call_operand.vmem [shape: f32[2,1,64], index: 9, kind: input, shape index: {}]
  %s10 = inlined_call_operand.vmem [shape: f32[2,1,64], index: 10, kind: input, shape index: {}]
  %s11 = inlined_call_operand.vmem [shape: f32[2,1,64], index: 11, kind: input, shape index: {}]
  %s12 = inlined_call_operand.vmem [shape: bf16[2,64,128], index: 12, kind: input, shape index: {}]
  %s13 = inlined_call_operand.vmem [shape: f32[2,1,128], index: 13, kind: input, shape index: {}]
  %s14 = inlined_call_operand.vmem [shape: bf16[2,128,64], index: 14, kind: input, shape index: {}]
  %s15 = inlined_call_operand.vmem [shape: f32[2,1,64], index: 15, kind: input, shape index: {}]
  %s16 = inlined_call_operand.vmem [shape: f32[2,1,64], index: 16, kind: input, shape index: {}]
  %s17 = inlined_call_operand.vmem [shape: f32[2,1,64], index: 17, kind: input, shape index: {}]
  %s18 = inlined_call_operand.vmem [shape: bf16[64,64], index: 18, kind: input, shape index: {}]
  %s19 = inlined_call_operand.vmem [shape: f32[1,64], index: 19, kind: input, shape index: {}]
  %s20 = inlined_call_operand.hbm [shape: f32[2,64], index: 20, kind: output, shape index: {}]
  %s21 = sld [smem:[#allocation0]]
  $region117: #{bert_forward.1} parent=0
    _
  %s23 = ssub.s32 1, %s21
  %s24 = scalar_select 0, %s23, %s21
  %s26 = sshll.u32 %s0, 4
  %s27 = int_to_ptr.vmem [resolvable:$true] %s26
  %29 = dma.vmem_to_smem %s27, 16, [#allocation4], [#allocation3]
  %31 = dma.done [#allocation3], 16
  %32 = sfence
  $region1: #{bert_forward.1} parent=0
    #allocation5 [shape = 'u8[1024]{0}', space=vmem, size = 0x400, scoped, tag = 'output window, operand 0, single buffered']
    #allocation6 [shape = 's32[2]{0}', space=sflag, size = 0x8, scoped, tag = 'scoped memory for bert_forward.1']
    %33 = vsyncpa [#allocation6], 0
    loop: start=0, step=1, limit=4
    $region2: #{bert_forward.1} parent=1 // loop_pre_header
      _
    $region3: #{bert_forward.1} parent=1 // loop_header
      %s35 = sphi 0, %s39
      %p36 = scmp.ge.s32.totalorder %s35, 4
      %s43 = sphi 0, %s43
      %s45 = sphi 0, %s43
      %s46 = sphi 0, %s45
      %s60 = sphi 0, %s46
      %s64 = sphi 0, %s64
      %s66 = sphi 0, %s64
      %s67 = sphi 0, %s66
      %s81 = sphi 0, %s67
      %s85 = sphi 0, %s85
      %s87 = sphi 0, %s85
      %s88 = sphi 0, %s87
      %s102 = sphi 0, %s88
      %s106 = sphi 0, %s106
      %s108 = sphi 0, %s106
      %s109 = sphi 0, %s108
      %s123 = sphi 0, %s109
      %s127 = sphi 0, %s127
      %s129 = sphi 0, %s127
      %s130 = sphi 0, %s129
      %s144 = sphi 0, %s130
      %s150 = sphi 0, %s152
      %s153 = sphi 0, %s150
      %s154 = sphi 0, %s153
      %s170 = sphi 0, %s154
      %s176 = sphi 0, %s178
      %s179 = sphi 0, %s176
      %s180 = sphi 0, %s179
      %s196 = sphi 0, %s180
      %s202 = sphi 0, %s204
      %s205 = sphi 0, %s202
      %s206 = sphi 0, %s205
      %s222 = sphi 0, %s206
      %s228 = sphi 0, %s230
      %s231 = sphi 0, %s228
      %s232 = sphi 0, %s231
      %s248 = sphi 0, %s232
      %s254 = sphi 0, %s256
      %s257 = sphi 0, %s254
      %s258 = sphi 0, %s257
      %s274 = sphi 0, %s258
      %s280 = sphi 0, %s282
      %s283 = sphi 0, %s280
      %s284 = sphi 0, %s283
      %s300 = sphi 0, %s284
      %s306 = sphi 0, %s308
      %s309 = sphi 0, %s306
      %s310 = sphi 0, %s309
      %s326 = sphi 0, %s310
      %s332 = sphi 0, %s334
      %s335 = sphi 0, %s332
      %s336 = sphi 0, %s335
      %s352 = sphi 0, %s336
      %s358 = sphi 0, %s360
      %s361 = sphi 0, %s358
      %s362 = sphi 0, %s361
      %s378 = sphi 0, %s362
      %s384 = sphi 0, %s386
      %s387 = sphi 0, %s384
      %s388 = sphi 0, %s387
      %s404 = sphi 0, %s388
      %s410 = sphi 0, %s412
      %s413 = sphi 0, %s410
      %s414 = sphi 0, %s413
      %s430 = sphi 0, %s414
      %s436 = sphi 0, %s438
      %s439 = sphi 0, %s436
      %s440 = sphi 0, %s439
      %s456 = sphi 0, %s440
      %s460 = sphi 0, %s460
      %s462 = sphi 0, %s460
      %s463 = sphi 0, %s462
      %s477 = sphi 0, %s463
      %s481 = sphi 0, %s481
      %s483 = sphi 0, %s481
      %s484 = sphi 0, %s483
      %s498 = sphi 0, %s484
      %s502 = sphi 0, %s502
      %s504 = sphi 0, %s502
      %s505 = sphi 0, %s504
      %s519 = sphi 0, %s505
    $region4: #{bert_forward.1} parent=1 // loop_header_branch
      %38 = sbr.rel (%p36) target = $region8
    $region5: #{bert_forward.1} parent=1 // loop_body
      %s40 = ssub.s32 %s35, 1
      %s41 = ssub.s32 %s35, 2
      %s42 = sadd.s32 %s35, 1
      %s44 = sadd.s32 %s43, 1
      %p47 = scmp.eq.s32.totalorder %s35, 1
      %p48 = scmp.ne.s32.totalorder %s43, %s45
      %p49 = scmp.eq.s32.totalorder %s35, 0
      %p50 = por %p48, %p49
      %p51 = scmp.ne.s32.totalorder %s43, %s45
      %p52 = scmp.eq.s32.totalorder %s40, 1
      %p53 = por %p51, %p52
      %p54 = scmp.ne.s32.totalorder %s45, %s46
      %p55 = scmp.eq.s32.totalorder %s40, 0
      %p56 = por %p54, %p55
      %p57 = scmp.ne.s32.totalorder %s45, %s46
      %p58 = scmp.eq.s32.totalorder %s41, 1
      %p59 = por %p57, %p58
      %p61 = scmp.ne.s32.totalorder %s46, %s60
      %p62 = scmp.eq.s32.totalorder %s41, 0
      %p63 = por %p61, %p62
      %s65 = sadd.s32 %s64, 1
      %p68 = scmp.eq.s32.totalorder %s35, 1
      %p69 = scmp.ne.s32.totalorder %s64, %s66
      %p70 = scmp.eq.s32.totalorder %s35, 0
      %p71 = por %p69, %p70
      %p72 = scmp.ne.s32.totalorder %s64, %s66
      %p73 = scmp.eq.s32.totalorder %s40, 1
      %p74 = por %p72, %p73
      %p75 = scmp.ne.s32.totalorder %s66, %s67
      %p76 = scmp.eq.s32.totalorder %s40, 0
      %p77 = por %p75, %p76
      %p78 = scmp.ne.s32.totalorder %s66, %s67
      %p79 = scmp.eq.s32.totalorder %s41, 1
      %p80 = por %p78, %p79
      %p82 = scmp.ne.s32.totalorder %s67, %s81
      %p83 = scmp.eq.s32.totalorder %s41, 0
      %p84 = por %p82, %p83
      %s86 = sadd.s32 %s85, 1
      %p89 = scmp.eq.s32.totalorder %s35, 1
      %p90 = scmp.ne.s32.totalorder %s85, %s87
      %p91 = scmp.eq.s32.totalorder %s35, 0
      %p92 = por %p90, %p91
      %p93 = scmp.ne.s32.totalorder %s85, %s87
      %p94 = scmp.eq.s32.totalorder %s40, 1
      %p95 = por %p93, %p94
      %p96 = scmp.ne.s32.totalorder %s87, %s88
      %p97 = scmp.eq.s32.totalorder %s40, 0
      %p98 = por %p96, %p97
      %p99 = scmp.ne.s32.totalorder %s87, %s88
      %p100 = scmp.eq.s32.totalorder %s41, 1
      %p101 = por %p99, %p100
      %p103 = scmp.ne.s32.totalorder %s88, %s102
      %p104 = scmp.eq.s32.totalorder %s41, 0
      %p105 = por %p103, %p104
      %s107 = sadd.s32 %s106, 1
      %p110 = scmp.eq.s32.totalorder %s35, 1
      %p111 = scmp.ne.s32.totalorder %s106, %s108
      %p112 = scmp.eq.s32.totalorder %s35, 0
      %p113 = por %p111, %p112
      %p114 = scmp.ne.s32.totalorder %s106, %s108
      %p115 = scmp.eq.s32.totalorder %s40, 1
      %p116 = por %p114, %p115
      %p117 = scmp.ne.s32.totalorder %s108, %s109
      %p118 = scmp.eq.s32.totalorder %s40, 0
      %p119 = por %p117, %p118
      %p120 = scmp.ne.s32.totalorder %s108, %s109
      %p121 = scmp.eq.s32.totalorder %s41, 1
      %p122 = por %p120, %p121
      %p124 = scmp.ne.s32.totalorder %s109, %s123
      %p125 = scmp.eq.s32.totalorder %s41, 0
      %p126 = por %p124, %p125
      %s128 = sadd.s32 %s127, 1
      %p131 = scmp.eq.s32.totalorder %s35, 1
      %p132 = scmp.ne.s32.totalorder %s127, %s129
      %p133 = scmp.eq.s32.totalorder %s35, 0
      %p134 = por %p132, %p133
      %p135 = scmp.ne.s32.totalorder %s127, %s129
      %p136 = scmp.eq.s32.totalorder %s40, 1
      %p137 = por %p135, %p136
      %p138 = scmp.ne.s32.totalorder %s129, %s130
      %p139 = scmp.eq.s32.totalorder %s40, 0
      %p140 = por %p138, %p139
      %p141 = scmp.ne.s32.totalorder %s129, %s130
      %p142 = scmp.eq.s32.totalorder %s41, 1
      %p143 = por %p141, %p142
      %p145 = scmp.ne.s32.totalorder %s130, %s144
      %p146 = scmp.eq.s32.totalorder %s41, 0
      %p147 = por %p145, %p146
      %s148 = ssub.s32 %s35, %s42
      %p149 = scmp.eq.s32.totalorder %s148, 0
      %s151 = sadd.s32 %s150, 1
      %s152 = scalar_select %p149, %s150, %s151
      %p155 = pneg %p149
      %p156 = scmp.eq.s32.totalorder %s35, 1
      %p157 = por %p155, %p156
      %p158 = scmp.ne.s32.totalorder %s150, %s153
      %p159 = scmp.eq.s32.totalorder %s35, 0
      %p160 = por %p158, %p159
      %p161 = scmp.ne.s32.totalorder %s150, %s153
      %p162 = scmp.eq.s32.totalorder %s40, 1
      %p163 = por %p161, %p162
      %p164 = scmp.ne.s32.totalorder %s153, %s154
      %p165 = scmp.eq.s32.totalorder %s40, 0
      %p166 = por %p164, %p165
      %p167 = scmp.ne.s32.totalorder %s153, %s154
      %p168 = scmp.eq.s32.totalorder %s41, 1
      %p169 = por %p167, %p168
      %p171 = scmp.ne.s32.totalorder %s154, %s170
      %p172 = scmp.eq.s32.totalorder %s41, 0
      %p173 = por %p171, %p172
      %s174 = ssub.s32 %s35, %s42
      %p175 = scmp.eq.s32.totalorder %s174, 0
      %s177 = sadd.s32 %s176, 1
      %s178 = scalar_select %p175, %s176, %s177
      %p181 = pneg %p175
      %p182 = scmp.eq.s32.totalorder %s35, 1
      %p183 = por %p181, %p182
      %p184 = scmp.ne.s32.totalorder %s176, %s179
      %p185 = scmp.eq.s32.totalorder %s35, 0
      %p186 = por %p184, %p185
      %p187 = scmp.ne.s32.totalorder %s176, %s179
      %p188 = scmp.eq.s32.totalorder %s40, 1
      %p189 = por %p187, %p188
      %p190 = scmp.ne.s32.totalorder %s179, %s180
      %p191 = scmp.eq.s32.totalorder %s40, 0
      %p192 = por %p190, %p191
      %p193 = scmp.ne.s32.totalorder %s179, %s180
      %p194 = scmp.eq.s32.totalorder %s41, 1
      %p195 = por %p193, %p194
      %p197 = scmp.ne.s32.totalorder %s180, %s196
      %p198 = scmp.eq.s32.totalorder %s41, 0
      %p199 = por %p197, %p198
      %s200 = ssub.s32 %s35, %s42
      %p201 = scmp.eq.s32.totalorder %s200, 0
      %s203 = sadd.s32 %s202, 1
      %s204 = scalar_select %p201, %s202, %s203
      %p207 = pneg %p201
      %p208 = scmp.eq.s32.totalorder %s35, 1
      %p209 = por %p207, %p208
      %p210 = scmp.ne.s32.totalorder %s202, %s205
      %p211 = scmp.eq.s32.totalorder %s35, 0
      %p212 = por %p210, %p211
      %p213 = scmp.ne.s32.totalorder %s202, %s205
      %p214 = scmp.eq.s32.totalorder %s40, 1
      %p215 = por %p213, %p214
      %p216 = scmp.ne.s32.totalorder %s205, %s206
      %p217 = scmp.eq.s32.totalorder %s40, 0
      %p218 = por %p216, %p217
      %p219 = scmp.ne.s32.totalorder %s205, %s206
      %p220 = scmp.eq.s32.totalorder %s41, 1
      %p221 = por %p219, %p220
      %p223 = scmp.ne.s32.totalorder %s206, %s222
      %p224 = scmp.eq.s32.totalorder %s41, 0
      %p225 = por %p223, %p224
      %s226 = ssub.s32 %s35, %s42
      %p227 = scmp.eq.s32.totalorder %s226, 0
      %s229 = sadd.s32 %s228, 1
      %s230 = scalar_select %p227, %s228, %s229
      %p233 = pneg %p227
      %p234 = scmp.eq.s32.totalorder %s35, 1
      %p235 = por %p233, %p234
      %p236 = scmp.ne.s32.totalorder %s228, %s231
      %p237 = scmp.eq.s32.totalorder %s35, 0
      %p238 = por %p236, %p237
      %p239 = scmp.ne.s32.totalorder %s228, %s231
      %p240 = scmp.eq.s32.totalorder %s40, 1
      %p241 = por %p239, %p240
      %p242 = scmp.ne.s32.totalorder %s231, %s232
      %p243 = scmp.eq.s32.totalorder %s40, 0
      %p244 = por %p242, %p243
      %p245 = scmp.ne.s32.totalorder %s231, %s232
      %p246 = scmp.eq.s32.totalorder %s41, 1
      %p247 = por %p245, %p246
      %p249 = scmp.ne.s32.totalorder %s232, %s248
      %p250 = scmp.eq.s32.totalorder %s41, 0
      %p251 = por %p249, %p250
      %s252 = ssub.s32 %s35, %s42
      %p253 = scmp.eq.s32.totalorder %s252, 0
      %s255 = sadd.s32 %s254, 1
      %s256 = scalar_select %p253, %s254, %s255
      %p259 = pneg %p253
      %p260 = scmp.eq.s32.totalorder %s35, 1
      %p261 = por %p259, %p260
      %p262 = scmp.ne.s32.totalorder %s254, %s257
      %p263 = scmp.eq.s32.totalorder %s35, 0
      %p264 = por %p262, %p263
      %p265 = scmp.ne.s32.totalorder %s254, %s257
      %p266 = scmp.eq.s32.totalorder %s40, 1
      %p267 = por %p265, %p266
      %p268 = scmp.ne.s32.totalorder %s257, %s258
      %p269 = scmp.eq.s32.totalorder %s40, 0
      %p270 = por %p268, %p269
      %p271 = scmp.ne.s32.totalorder %s257, %s258
      %p272 = scmp.eq.s32.totalorder %s41, 1
      %p273 = por %p271, %p272
      %p275 = scmp.ne.s32.totalorder %s258, %s274
      %p276 = scmp.eq.s32.totalorder %s41, 0
      %p277 = por %p275, %p276
      %s278 = ssub.s32 %s35, %s42
      %p279 = scmp.eq.s32.totalorder %s278, 0
      %s281 = sadd.s32 %s280, 1
      %s282 = scalar_select %p279, %s280, %s281
      %p285 = pneg %p279
      %p286 = scmp.eq.s32.totalorder %s35, 1
      %p287 = por %p285, %p286
      %p288 = scmp.ne.s32.totalorder %s280, %s283
      %p289 = scmp.eq.s32.totalorder %s35, 0
      %p290 = por %p288, %p289
      %p291 = scmp.ne.s32.totalorder %s280, %s283
      %p292 = scmp.eq.s32.totalorder %s40, 1
      %p293 = por %p291, %p292
      %p294 = scmp.ne.s32.totalorder %s283, %s284
      %p295 = scmp.eq.s32.totalorder %s40, 0
      %p296 = por %p294, %p295
      %p297 = scmp.ne.s32.totalorder %s283, %s284
      %p298 = scmp.eq.s32.totalorder %s41, 1
      %p299 = por %p297, %p298
      %p301 = scmp.ne.s32.totalorder %s284, %s300
      %p302 = scmp.eq.s32.totalorder %s41, 0
      %p303 = por %p301, %p302
      %s304 = ssub.s32 %s35, %s42
      %p305 = scmp.eq.s32.totalorder %s304, 0
      %s307 = sadd.s32 %s306, 1
      %s308 = scalar_select %p305, %s306, %s307
      %p311 = pneg %p305
      %p312 = scmp.eq.s32.totalorder %s35, 1
      %p313 = por %p311, %p312
      %p314 = scmp.ne.s32.totalorder %s306, %s309
      %p315 = scmp.eq.s32.totalorder %s35, 0
      %p316 = por %p314, %p315
      %p317 = scmp.ne.s32.totalorder %s306, %s309
      %p318 = scmp.eq.s32.totalorder %s40, 1
      %p319 = por %p317, %p318
      %p320 = scmp.ne.s32.totalorder %s309, %s310
      %p321 = scmp.eq.s32.totalorder %s40, 0
      %p322 = por %p320, %p321
      %p323 = scmp.ne.s32.totalorder %s309, %s310
      %p324 = scmp.eq.s32.totalorder %s41, 1
      %p325 = por %p323, %p324
      %p327 = scmp.ne.s32.totalorder %s310, %s326
      %p328 = scmp.eq.s32.totalorder %s41, 0
      %p329 = por %p327, %p328
      %s330 = ssub.s32 %s35, %s42
      %p331 = scmp.eq.s32.totalorder %s330, 0
      %s333 = sadd.s32 %s332, 1
      %s334 = scalar_select %p331, %s332, %s333
      %p337 = pneg %p331
      %p338 = scmp.eq.s32.totalorder %s35, 1
      %p339 = por %p337, %p338
      %p340 = scmp.ne.s32.totalorder %s332, %s335
      %p341 = scmp.eq.s32.totalorder %s35, 0
      %p342 = por %p340, %p341
      %p343 = scmp.ne.s32.totalorder %s332, %s335
      %p344 = scmp.eq.s32.totalorder %s40, 1
      %p345 = por %p343, %p344
      %p346 = scmp.ne.s32.totalorder %s335, %s336
      %p347 = scmp.eq.s32.totalorder %s40, 0
      %p348 = por %p346, %p347
      %p349 = scmp.ne.s32.totalorder %s335, %s336
      %p350 = scmp.eq.s32.totalorder %s41, 1
      %p351 = por %p349, %p350
      %p353 = scmp.ne.s32.totalorder %s336, %s352
      %p354 = scmp.eq.s32.totalorder %s41, 0
      %p355 = por %p353, %p354
      %s356 = ssub.s32 %s35, %s42
      %p357 = scmp.eq.s32.totalorder %s356, 0
      %s359 = sadd.s32 %s358, 1
      %s360 = scalar_select %p357, %s358, %s359
      %p363 = pneg %p357
      %p364 = scmp.eq.s32.totalorder %s35, 1
      %p365 = por %p363, %p364
      %p366 = scmp.ne.s32.totalorder %s358, %s361
      %p367 = scmp.eq.s32.totalorder %s35, 0
      %p368 = por %p366, %p367
      %p369 = scmp.ne.s32.totalorder %s358, %s361
      %p370 = scmp.eq.s32.totalorder %s40, 1
      %p371 = por %p369, %p370
      %p372 = scmp.ne.s32.totalorder %s361, %s362
      %p373 = scmp.eq.s32.totalorder %s40, 0
      %p374 = por %p372, %p373
      %p375 = scmp.ne.s32.totalorder %s361, %s362
      %p376 = scmp.eq.s32.totalorder %s41, 1
      %p377 = por %p375, %p376
      %p379 = scmp.ne.s32.totalorder %s362, %s378
      %p380 = scmp.eq.s32.totalorder %s41, 0
      %p381 = por %p379, %p380
      %s382 = ssub.s32 %s35, %s42
      %p383 = scmp.eq.s32.totalorder %s382, 0
      %s385 = sadd.s32 %s384, 1
      %s386 = scalar_select %p383, %s384, %s385
      %p389 = pneg %p383
      %p390 = scmp.eq.s32.totalorder %s35, 1
      %p391 = por %p389, %p390
      %p392 = scmp.ne.s32.totalorder %s384, %s387
      %p393 = scmp.eq.s32.totalorder %s35, 0
      %p394 = por %p392, %p393
      %p395 = scmp.ne.s32.totalorder %s384, %s387
      %p396 = scmp.eq.s32.totalorder %s40, 1
      %p397 = por %p395, %p396
      %p398 = scmp.ne.s32.totalorder %s387, %s388
      %p399 = scmp.eq.s32.totalorder %s40, 0
      %p400 = por %p398, %p399
      %p401 = scmp.ne.s32.totalorder %s387, %s388
      %p402 = scmp.eq.s32.totalorder %s41, 1
      %p403 = por %p401, %p402
      %p405 = scmp.ne.s32.totalorder %s388, %s404
      %p406 = scmp.eq.s32.totalorder %s41, 0
      %p407 = por %p405, %p406
      %s408 = ssub.s32 %s35, %s42
      %p409 = scmp.eq.s32.totalorder %s408, 0
      %s411 = sadd.s32 %s410, 1
      %s412 = scalar_select %p409, %s410, %s411
      %p415 = pneg %p409
      %p416 = scmp.eq.s32.totalorder %s35, 1
      %p417 = por %p415, %p416
      %p418 = scmp.ne.s32.totalorder %s410, %s413
      %p419 = scmp.eq.s32.totalorder %s35, 0
      %p420 = por %p418, %p419
      %p421 = scmp.ne.s32.totalorder %s410, %s413
      %p422 = scmp.eq.s32.totalorder %s40, 1
      %p423 = por %p421, %p422
      %p424 = scmp.ne.s32.totalorder %s413, %s414
      %p425 = scmp.eq.s32.totalorder %s40, 0
      %p426 = por %p424, %p425
      %p427 = scmp.ne.s32.totalorder %s413, %s414
      %p428 = scmp.eq.s32.totalorder %s41, 1
      %p429 = por %p427, %p428
      %p431 = scmp.ne.s32.totalorder %s414, %s430
      %p432 = scmp.eq.s32.totalorder %s41, 0
      %p433 = por %p431, %p432
      %s434 = ssub.s32 %s35, %s42
      %p435 = scmp.eq.s32.totalorder %s434, 0
      %s437 = sadd.s32 %s436, 1
      %s438 = scalar_select %p435, %s436, %s437
      %p441 = pneg %p435
      %p442 = scmp.eq.s32.totalorder %s35, 1
      %p443 = por %p441, %p442
      %p444 = scmp.ne.s32.totalorder %s436, %s439
      %p445 = scmp.eq.s32.totalorder %s35, 0
      %p446 = por %p444, %p445
      %p447 = scmp.ne.s32.totalorder %s436, %s439
      %p448 = scmp.eq.s32.totalorder %s40, 1
      %p449 = por %p447, %p448
      %p450 = scmp.ne.s32.totalorder %s439, %s440
      %p451 = scmp.eq.s32.totalorder %s40, 0
      %p452 = por %p450, %p451
      %p453 = scmp.ne.s32.totalorder %s439, %s440
      %p454 = scmp.eq.s32.totalorder %s41, 1
      %p455 = por %p453, %p454
      %p457 = scmp.ne.s32.totalorder %s440, %s456
      %p458 = scmp.eq.s32.totalorder %s41, 0
      %p459 = por %p457, %p458
      %s461 = sadd.s32 %s460, 1
      %p464 = scmp.eq.s32.totalorder %s35, 1
      %p465 = scmp.ne.s32.totalorder %s460, %s462
      %p466 = scmp.eq.s32.totalorder %s35, 0
      %p467 = por %p465, %p466
      %p468 = scmp.ne.s32.totalorder %s460, %s462
      %p469 = scmp.eq.s32.totalorder %s40, 1
      %p470 = por %p468, %p469
      %p471 = scmp.ne.s32.totalorder %s462, %s463
      %p472 = scmp.eq.s32.totalorder %s40, 0
      %p473 = por %p471, %p472
      %p474 = scmp.ne.s32.totalorder %s462, %s463
      %p475 = scmp.eq.s32.totalorder %s41, 1
      %p476 = por %p474, %p475
      %p478 = scmp.ne.s32.totalorder %s463, %s477
      %p479 = scmp.eq.s32.totalorder %s41, 0
      %p480 = por %p478, %p479
      %s482 = sadd.s32 %s481, 1
      %p485 = scmp.eq.s32.totalorder %s35, 1
      %p486 = scmp.ne.s32.totalorder %s481, %s483
      %p487 = scmp.eq.s32.totalorder %s35, 0
      %p488 = por %p486, %p487
      %p489 = scmp.ne.s32.totalorder %s481, %s483
      %p490 = scmp.eq.s32.totalorder %s40, 1
      %p491 = por %p489, %p490
      %p492 = scmp.ne.s32.totalorder %s483, %s484
      %p493 = scmp.eq.s32.totalorder %s40, 0
      %p494 = por %p492, %p493
      %p495 = scmp.ne.s32.totalorder %s483, %s484
      %p496 = scmp.eq.s32.totalorder %s41, 1
      %p497 = por %p495, %p496
      %p499 = scmp.ne.s32.totalorder %s484, %s498
      %p500 = scmp.eq.s32.totalorder %s41, 0
      %p501 = por %p499, %p500
      %s503 = sadd.s32 %s502, 1
      %p506 = scmp.eq.s32.totalorder %s35, 1
      %p507 = scmp.ne.s32.totalorder %s502, %s504
      %p508 = scmp.eq.s32.totalorder %s35, 0
      %p509 = por %p507, %p508
      %p510 = scmp.ne.s32.totalorder %s502, %s504
      %p511 = scmp.eq.s32.totalorder %s40, 1
      %p512 = por %p510, %p511
      %p513 = scmp.ne.s32.totalorder %s504, %s505
      %p514 = scmp.eq.s32.totalorder %s40, 0
      %p515 = por %p513, %p514
      %p516 = scmp.ne.s32.totalorder %s504, %s505
      %p517 = scmp.eq.s32.totalorder %s41, 1
      %p518 = por %p516, %p517
      %p520 = scmp.ne.s32.totalorder %s505, %s519
      %p521 = scmp.eq.s32.totalorder %s41, 0
      %p522 = por %p520, %p521
      %p523 = scmp.le.s32.totalorder 1, %s35
      %p524 = scmp.lt.s32.totalorder %s35, 3
      %p525 = pnand %p523, %p524
      %p526 = pneg %p525
      // Predicated region
      $region9: #{bert_forward.1} parent=5 // pred_check
        _
      $region10: #{bert_forward.1} parent=5 // pred_check_branch
        %528 = sbr.rel (%p525) target = $region12
      $region11: #{bert_forward.1} parent=5 // pred_region
        %s529 = ssub.s32 %s35, 1
        // Predicated region
        $region13: #{bert_forward.1} parent=11 // pred_check
          %p530 = pneg %p56
        $region14: #{bert_forward.1} parent=11 // pred_check_branch
          %532 = sbr.rel (%p530) target = $region16
        $region15: #{bert_forward.1} parent=11 // pred_region
          _
        $region16: #{bert_forward.1} parent=11 // pred_fallthru
          _
        // Predicated region
        $region17: #{bert_forward.1} parent=11 // pred_check
          %p533 = pneg %p77
        $region18: #{bert_forward.1} parent=11 // pred_check_branch
          %535 = sbr.rel (%p533) target = $region20
        $region19: #{bert_forward.1} parent=11 // pred_region
          _
        $region20: #{bert_forward.1} parent=11 // pred_fallthru
          _
        // Predicated region
        $region21: #{bert_forward.1} parent=11 // pred_check
          %p536 = pneg %p98
        $region22: #{bert_forward.1} parent=11 // pred_check_branch
          %538 = sbr.rel (%p536) target = $region24
        $region23: #{bert_forward.1} parent=11 // pred_region
          _
        $region24: #{bert_forward.1} parent=11 // pred_fallthru
          _
        // Predicated region
        $region25: #{bert_forward.1} parent=11 // pred_check
          %p539 = pneg %p119
        $region26: #{bert_forward.1} parent=11 // pred_check_branch
          %541 = sbr.rel (%p539) target = $region28
        $region27: #{bert_forward.1} parent=11 // pred_region
          _
        $region28: #{bert_forward.1} parent=11 // pred_fallthru
          _
        // Predicated region
        $region29: #{bert_forward.1} parent=11 // pred_check
          %p542 = pneg %p140
        $region30: #{bert_forward.1} parent=11 // pred_check_branch
          %544 = sbr.rel (%p542) target = $region32
        $region31: #{bert_forward.1} parent=11 // pred_region
          _
        $region32: #{bert_forward.1} parent=11 // pred_fallthru
          _
        // Predicated region
        $region33: #{bert_forward.1} parent=11 // pred_check
          %p545 = pneg %p473
        $region34: #{bert_forward.1} parent=11 // pred_check_branch
          %547 = sbr.rel (%p545) target = $region36
        $region35: #{bert_forward.1} parent=11 // pred_region
          _
        $region36: #{bert_forward.1} parent=11 // pred_fallthru
          _
        // Predicated region
        $region37: #{bert_forward.1} parent=11 // pred_check
          %p548 = pneg %p494
        $region38: #{bert_forward.1} parent=11 // pred_check_branch
          %550 = sbr.rel (%p548) target = $region40
        $region39: #{bert_forward.1} parent=11 // pred_region
          _
        $region40: #{bert_forward.1} parent=11 // pred_fallthru
          _
      $region12: #{bert_forward.1} parent=5 // pred_fallthru
        _
      %p551 = scmp.lt.s32.totalorder %s35, 2
      // Predicated region
      $region41: #{bert_forward.1} parent=5 // pred_check
        %p552 = pneg %p551
      $region42: #{bert_forward.1} parent=5 // pred_check_branch
        %554 = sbr.rel (%p552) target = $region44
      $region43: #{bert_forward.1} parent=5 // pred_region
        // Predicated region
        $region45: #{bert_forward.1} parent=43 // pred_check
          %p555 = pneg %p160
        $region46: #{bert_forward.1} parent=43 // pred_check_branch
          %557 = sbr.rel (%p555) target = $region48
        $region47: #{bert_forward.1} parent=43 // pred_region
          %p558 = scmp.lt.s32.totalorder %s35, 1
          %s559 = scalar_select %p558, %s35, 1
          %s560 = smul.addr %s559, 16
          %s561 = smul.addr %s560, 4
          %s562 = scalar_lea.vmem %s6, %s561
        $region48: #{bert_forward.1} parent=43 // pred_fallthru
          _
        // Predicated region
        $region49: #{bert_forward.1} parent=43 // pred_check
          %p563 = pneg %p186
        $region50: #{bert_forward.1} parent=43 // pred_check_branch
          %565 = sbr.rel (%p563) target = $region52
        $region51: #{bert_forward.1} parent=43 // pred_region
          %p566 = scmp.lt.s32.totalorder %s35, 1
          %s567 = scalar_select %p566, %s35, 1
          %s568 = smul.addr %s567, 2
          %s569 = scalar_lea.vmem %s7, %s568
        $region52: #{bert_forward.1} parent=43 // pred_fallthru
          _
        // Predicated region
        $region53: #{bert_forward.1} parent=43 // pred_check
          %p570 = pneg %p212
        $region54: #{bert_forward.1} parent=43 // pred_check_branch
          %572 = sbr.rel (%p570) target = $region56
        $region55: #{bert_forward.1} parent=43 // pred_region
          %p573 = scmp.lt.s32.totalorder %s35, 1
          %s574 = scalar_select %p573, %s35, 1
          %s575 = smul.addr %s574, 8
          %s576 = smul.addr %s575, 4
          %s577 = scalar_lea.vmem %s8, %s576
        $region56: #{bert_forward.1} parent=43 // pred_fallthru
          _
        // Predicated region
        $region57: #{bert_forward.1} parent=43 // pred_check
          %p578 = pneg %p238
        $region58: #{bert_forward.1} parent=43 // pred_check_branch
          %580 = sbr.rel (%p578) target = $region60
        $region59: #{bert_forward.1} parent=43 // pred_region
          %p581 = scmp.lt.s32.totalorder %s35, 1
          %s582 = scalar_select %p581, %s35, 1
          %s583 = scalar_lea.vmem %s9, %s582
        $region60: #{bert_forward.1} parent=43 // pred_fallthru
          _
        // Predicated region
        $region61: #{bert_forward.1} parent=43 // pred_check
          %p584 = pneg %p264
        $region62: #{bert_forward.1} parent=43 // pred_check_branch
          %586 = sbr.rel (%p584) target = $region64
        $region63: #{bert_forward.1} parent=43 // pred_region
          %p587 = scmp.lt.s32.totalorder %s35, 1
          %s588 = scalar_select %p587, %s35, 1
          %s589 = scalar_lea.vmem %s10, %s588
        $region64: #{bert_forward.1} parent=43 // pred_fallthru
          _
        // Predicated region
        $region65: #{bert_forward.1} parent=43 // pred_check
          %p590 = pneg %p290
        $region66: #{bert_forward.1} parent=43 // pred_check_branch
          %592 = sbr.rel (%p590) target = $region68
        $region67: #{bert_forward.1} parent=43 // pred_region
          %p593 = scmp.lt.s32.totalorder %s35, 1
          %s594 = scalar_select %p593, %s35, 1
          %s595 = scalar_lea.vmem %s11, %s594
        $region68: #{bert_forward.1} parent=43 // pred_fallthru
          _
        // Predicated region
        $region69: #{bert_forward.1} parent=43 // pred_check
          %p596 = pneg %p316
        $region70: #{bert_forward.1} parent=43 // pred_check_branch
          %598 = sbr.rel (%p596) target = $region72
        $region71: #{bert_forward.1} parent=43 // pred_region
          %p599 = scmp.lt.s32.totalorder %s35, 1
          %s600 = scalar_select %p599, %s35, 1
          %s601 = smul.addr %s600, 8
          %s602 = smul.addr %s601, 4
          %s603 = scalar_lea.vmem %s12, %s602
        $region72: #{bert_forward.1} parent=43 // pred_fallthru
          _
        // Predicated region
        $region73: #{bert_forward.1} parent=43 // pred_check
          %p604 = pneg %p342
        $region74: #{bert_forward.1} parent=43 // pred_check_branch
          %606 = sbr.rel (%p604) target = $region76
        $region75: #{bert_forward.1} parent=43 // pred_region
          %p607 = scmp.lt.s32.totalorder %s35, 1
          %s608 = scalar_select %p607, %s35, 1
          %s609 = scalar_lea.vmem %s13, %s608
        $region76: #{bert_forward.1} parent=43 // pred_fallthru
          _
        // Predicated region
        $region77: #{bert_forward.1} parent=43 // pred_check
          %p610 = pneg %p368
        $region78: #{bert_forward.1} parent=43 // pred_check_branch
          %612 = sbr.rel (%p610) target = $region80
        $region79: #{bert_forward.1} parent=43 // pred_region
          %p613 = scmp.lt.s32.totalorder %s35, 1
          %s614 = scalar_select %p613, %s35, 1
          %s615 = smul.addr %s614, 16
          %s616 = smul.addr %s615, 4
          %s617 = scalar_lea.vmem %s14, %s616
        $region80: #{bert_forward.1} parent=43 // pred_fallthru
          _
        // Predicated region
        $region81: #{bert_forward.1} parent=43 // pred_check
          %p618 = pneg %p394
        $region82: #{bert_forward.1} parent=43 // pred_check_branch
          %620 = sbr.rel (%p618) target = $region84
        $region83: #{bert_forward.1} parent=43 // pred_region
          %p621 = scmp.lt.s32.totalorder %s35, 1
          %s622 = scalar_select %p621, %s35, 1
          %s623 = scalar_lea.vmem %s15, %s622
        $region84: #{bert_forward.1} parent=43 // pred_fallthru
          _
        // Predicated region
        $region85: #{bert_forward.1} parent=43 // pred_check
          %p624 = pneg %p420
        $region86: #{bert_forward.1} parent=43 // pred_check_branch
          %626 = sbr.rel (%p624) target = $region88
        $region87: #{bert_forward.1} parent=43 // pred_region
          %p627 = scmp.lt.s32.totalorder %s35, 1
          %s628 = scalar_select %p627, %s35, 1
          %s629 = scalar_lea.vmem %s16, %s628
        $region88: #{bert_forward.1} parent=43 // pred_fallthru
          _
        // Predicated region
        $region89: #{bert_forward.1} parent=43 // pred_check
          %p630 = pneg %p446
        $region90: #{bert_forward.1} parent=43 // pred_check_branch
          %632 = sbr.rel (%p630) target = $region92
        $region91: #{bert_forward.1} parent=43 // pred_region
          %p633 = scmp.lt.s32.totalorder %s35, 1
          %s634 = scalar_select %p633, %s35, 1
          %s635 = scalar_lea.vmem %s17, %s634
        $region92: #{bert_forward.1} parent=43 // pred_fallthru
          _
      $region44: #{bert_forward.1} parent=5 // pred_fallthru
        _
      %p636 = scmp.le.s32.totalorder 1, %s35
      %p637 = scmp.lt.s32.totalorder %s35, 3
      %p638 = pnand %p636, %p637
      %p639 = pneg %p638
      // Predicated region
      $region93: #{bert_forward.1} parent=5 // pred_check
        _
      $region94: #{bert_forward.1} parent=5 // pred_check_branch
        %641 = sbr.rel (%p638) target = $region96
      $region95: #{bert_forward.1} parent=5 // pred_region
        %s642 = ssub.s32 %s35, 1
        %p643 = pneg %p56
        %p644 = pneg %p53
        %p645 = pneg %p77
        %p646 = pneg %p74
        %p647 = pneg %p98
        %p648 = pneg %p95
        %p649 = pneg %p119
        %p650 = pneg %p116
        %p651 = pneg %p140
        %p652 = pneg %p137
        %p653 = scmp.lt.s32.totalorder %s40, 1
        %s654 = scalar_select %p653, %s40, 1
        %s655 = smul.addr %s654, 16
        %s656 = smul.addr %s655, 4
        %s657 = scalar_lea.vmem %s6, %s656
        %p658 = pneg %p166
        %p659 = pneg %p163
        %p660 = scmp.lt.s32.totalorder %s40, 1
        %s661 = scalar_select %p660, %s40, 1
        %s662 = smul.addr %s661, 2
        %s663 = scalar_lea.vmem %s7, %s662
        %p664 = pneg %p192
        %p665 = pneg %p189
        %p666 = scmp.lt.s32.totalorder %s40, 1
        %s667 = scalar_select %p666, %s40, 1
        %s668 = smul.addr %s667, 8
        %s669 = smul.addr %s668, 4
        %s670 = scalar_lea.vmem %s8, %s669
        %p671 = pneg %p218
        %p672 = pneg %p215
        %p673 = scmp.lt.s32.totalorder %s40, 1
        %s674 = scalar_select %p673, %s40, 1
        %s675 = scalar_lea.vmem %s9, %s674
        %p676 = pneg %p244
        %p677 = pneg %p241
        %p678 = scmp.lt.s32.totalorder %s40, 1
        %s679 = scalar_select %p678, %s40, 1
        %s680 = scalar_lea.vmem %s10, %s679
        %p681 = pneg %p270
        %p682 = pneg %p267
        %p683 = scmp.lt.s32.totalorder %s40, 1
        %s684 = scalar_select %p683, %s40, 1
        %s685 = scalar_lea.vmem %s11, %s684
        %p686 = pneg %p296
        %p687 = pneg %p293
        %p688 = scmp.lt.s32.totalorder %s40, 1
        %s689 = scalar_select %p688, %s40, 1
        %s690 = smul.addr %s689, 8
        %s691 = smul.addr %s690, 4
        %s692 = scalar_lea.vmem %s12, %s691
        %p693 = pneg %p322
        %p694 = pneg %p319
        %p695 = scmp.lt.s32.totalorder %s40, 1
        %s696 = scalar_select %p695, %s40, 1
        %s697 = scalar_lea.vmem %s13, %s696
        %p698 = pneg %p348
        %p699 = pneg %p345
        %p700 = scmp.lt.s32.totalorder %s40, 1
        %s701 = scalar_select %p700, %s40, 1
        %s702 = smul.addr %s701, 16
        %s703 = smul.addr %s702, 4
        %s704 = scalar_lea.vmem %s14, %s703
        %p705 = pneg %p374
        %p706 = pneg %p371
        %p707 = scmp.lt.s32.totalorder %s40, 1
        %s708 = scalar_select %p707, %s40, 1
        %s709 = scalar_lea.vmem %s15, %s708
        %p710 = pneg %p400
        %p711 = pneg %p397
        %p712 = scmp.lt.s32.totalorder %s40, 1
        %s713 = scalar_select %p712, %s40, 1
        %s714 = scalar_lea.vmem %s16, %s713
        %p715 = pneg %p426
        %p716 = pneg %p423
        %p717 = scmp.lt.s32.totalorder %s40, 1
        %s718 = scalar_select %p717, %s40, 1
        %s719 = scalar_lea.vmem %s17, %s718
        %p720 = pneg %p452
        %p721 = pneg %p449
        %p722 = pneg %p473
        %p723 = pneg %p470
        %p724 = pneg %p494
        %p725 = pneg %p491
        %p726 = pneg %p515
        %p727 = pneg %p512
        %p728 = scmp.lt.s32.totalorder %s40, 1
        %s729 = scalar_select %p728, %s40, 1
        %s730 = smul.addr %s729, 16
        %s731 = smul.addr %s730, 4
        %s732 = scalar_lea.vmem %s6, %s731
        %p733 = scmp.lt.s32.totalorder %s40, 1
        %s734 = scalar_select %p733, %s40, 1
        %s735 = smul.addr %s734, 2
        %s736 = scalar_lea.vmem %s7, %s735
        %p737 = scmp.lt.s32.totalorder %s40, 1
        %s738 = scalar_select %p737, %s40, 1
        %s739 = smul.addr %s738, 8
        %s740 = smul.addr %s739, 4
        %s741 = scalar_lea.vmem %s8, %s740
        %p742 = scmp.lt.s32.totalorder %s40, 1
        %s743 = scalar_select %p742, %s40, 1
        %s744 = scalar_lea.vmem %s9, %s743
        %p745 = scmp.lt.s32.totalorder %s40, 1
        %s746 = scalar_select %p745, %s40, 1
        %s747 = scalar_lea.vmem %s10, %s746
        %p748 = scmp.lt.s32.totalorder %s40, 1
        %s749 = scalar_select %p748, %s40, 1
        %s750 = scalar_lea.vmem %s11, %s749
        %p751 = scmp.lt.s32.totalorder %s40, 1
        %s752 = scalar_select %p751, %s40, 1
        %s753 = smul.addr %s752, 8
        %s754 = smul.addr %s753, 4
        %s755 = scalar_lea.vmem %s12, %s754
        %p756 = scmp.lt.s32.totalorder %s40, 1
        %s757 = scalar_select %p756, %s40, 1
        %s758 = scalar_lea.vmem %s13, %s757
        %p759 = scmp.lt.s32.totalorder %s40, 1
        %s760 = scalar_select %p759, %s40, 1
        %s761 = smul.addr %s760, 16
        %s762 = smul.addr %s761, 4
        %s763 = scalar_lea.vmem %s14, %s762
        %p764 = scmp.lt.s32.totalorder %s40, 1
        %s765 = scalar_select %p764, %s40, 1
        %s766 = scalar_lea.vmem %s15, %s765
        %p767 = scmp.lt.s32.totalorder %s40, 1
        %s768 = scalar_select %p767, %s40, 1
        %s769 = scalar_lea.vmem %s16, %s768
        %p770 = scmp.lt.s32.totalorder %s40, 1
        %s771 = scalar_select %p770, %s40, 1
        %s772 = scalar_lea.vmem %s17, %s771
        %p774 = scmp.eq.s32.totalorder %s40, 0
        // Predicated region
        $region97: #{bert_forward.1} parent=95 // pred_check
          %p775 = pneg %p774
        $region98: #{bert_forward.1} parent=95 // pred_check_branch
          %777 = sbr.rel (%p775) target = $region100
        $region99: #{bert_forward.1} parent=95 // pred_region
          %s778 = sld [smem:[#allocation4]]
          %s779 = scalar_lea.vmem %s1, %s778
          %v780 = vld [vmem:[%s779] sm:$0x1]
          %vm781 = vcmask 516096
          %782 = vst.msk [vmem:[#allocation2] sm:$0x1] %vm781, %v780
          %s783 = sld [smem:[#allocation4 + $0x1]]
          %s784 = scalar_lea.vmem %s1, %s783
          %v785 = vld [vmem:[%s784] sm:$0x1]
          %786 = vst.msk [vmem:[#allocation2 + $0x1] sm:$0x1] %vm781, %v785
          %s787 = sld [smem:[#allocation4 + $0x2]]
          %s788 = scalar_lea.vmem %s1, %s787
          %v789 = vld [vmem:[%s788] sm:$0x1]
          %790 = vst.msk [vmem:[#allocation2 + $0x2] sm:$0x1] %vm781, %v789
          %s791 = sld [smem:[#allocation4 + $0x3]]
          %s792 = scalar_lea.vmem %s1, %s791
          %v793 = vld [vmem:[%s792] sm:$0x1]
          %794 = vst.msk [vmem:[#allocation2 + $0x3] sm:$0x1] %vm781, %v793
          %s795 = sld [smem:[#allocation4 + $0x4]]
          %s796 = scalar_lea.vmem %s1, %s795
          %v797 = vld [vmem:[%s796] sm:$0x1]
          %798 = vst.msk [vmem:[#allocation2 + $0x4] sm:$0x1] %vm781, %v797
          %s799 = sld [smem:[#allocation4 + $0x5]]
          %s800 = scalar_lea.vmem %s1, %s799
          %v801 = vld [vmem:[%s800] sm:$0x1]
          %802 = vst.msk [vmem:[#allocation2 + $0x5] sm:$0x1] %vm781, %v801
          %s803 = sld [smem:[#allocation4 + $0x6]]
          %s804 = scalar_lea.vmem %s1, %s803
          %v805 = vld [vmem:[%s804] sm:$0x1]
          %806 = vst.msk [vmem:[#allocation2 + $0x6] sm:$0x1] %vm781, %v805
          %s807 = sld [smem:[#allocation4 + $0x7]]
          %s808 = scalar_lea.vmem %s1, %s807
          %v809 = vld [vmem:[%s808] sm:$0x1]
          %810 = vst.msk [vmem:[#allocation2 + $0x7] sm:$0x1] %vm781, %v809
          %s811 = sld [smem:[#allocation4 + $0x8]]
          %s812 = scalar_lea.vmem %s1, %s811
          %v813 = vld [vmem:[%s812] sm:$0x1]
          %814 = vst.msk [vmem:[#allocation2 + $0x8] sm:$0x1] %vm781, %v813
          %s815 = sld [smem:[#allocation4 + $0x9]]
          %s816 = scalar_lea.vmem %s1, %s815
          %v817 = vld [vmem:[%s816] sm:$0x1]
          %818 = vst.msk [vmem:[#allocation2 + $0x9] sm:$0x1] %vm781, %v817
          %s819 = sld [smem:[#allocation4 + $0xa]]
          %s820 = scalar_lea.vmem %s1, %s819
          %v821 = vld [vmem:[%s820] sm:$0x1]
          %822 = vst.msk [vmem:[#allocation2 + $0xa] sm:$0x1] %vm781, %v821
          %s823 = sld [smem:[#allocation4 + $0xb]]
          %s824 = scalar_lea.vmem %s1, %s823
          %v825 = vld [vmem:[%s824] sm:$0x1]
          %826 = vst.msk [vmem:[#allocation2 + $0xb] sm:$0x1] %vm781, %v825
          %s827 = sld [smem:[#allocation4 + $0xc]]
          %s828 = scalar_lea.vmem %s1, %s827
          %v829 = vld [vmem:[%s828] sm:$0x1]
          %830 = vst.msk [vmem:[#allocation2 + $0xc] sm:$0x1] %vm781, %v829
          %s831 = sld [smem:[#allocation4 + $0xd]]
          %s832 = scalar_lea.vmem %s1, %s831
          %v833 = vld [vmem:[%s832] sm:$0x1]
          %834 = vst.msk [vmem:[#allocation2 + $0xd] sm:$0x1] %vm781, %v833
          %s835 = sld [smem:[#allocation4 + $0xe]]
          %s836 = scalar_lea.vmem %s1, %s835
          %v837 = vld [vmem:[%s836] sm:$0x1]
          %838 = vst.msk [vmem:[#allocation2 + $0xe] sm:$0x1] %vm781, %v837
          %s839 = sld [smem:[#allocation4 + $0xf]]
          %s840 = scalar_lea.vmem %s1, %s839
          %v841 = vld [vmem:[%s840] sm:$0x1]
          %842 = vst.msk [vmem:[#allocation2 + $0xf] sm:$0x1] %vm781, %v841
          %v843 = vld [vmem:[%s2] sm:$0xff]
          %v844 = vld [vmem:[#allocation2] sm:$0xff]
          %v845 = vld [vmem:[#allocation2 + $0x8] sm:$0xff]
          %v846 = vadd.f32 %v844, %v843
          %v847 = vadd.f32 %v845, %v843
          %v848 = vld [vmem:[%s4] sm:$0x1]
          %v849 = vld [vmem:[%s5] sm:$0x1]
          %vm850 = vcmask 523264
          %v851 = vsel %vm850, %v846, 0.0
          %852 = vadd.xlane.f32.xlu0 %v851
          %v853 = vpop.xlane.xlu0 %852
          %v854 = vsel %vm850, %v847, 0.0
          %855 = vadd.xlane.f32.xlu0 %v854
          %v856 = vpop.xlane.xlu0 %855
          %v857 = vrcp.pop 64.0
          %v858 = vmul.f32 64.0, %v857
          %v859 = vsub.f32 1.0, %v858
          %v860 = vmul.f32 %v857, %v859
          %v861 = vadd.f32 %v857, %v860
          %vm862 = vweird.f32 %v857
          %v863 = vsel %vm862, %v857, %v861
          %v864 = vmul.f32 %v853, %v863
          %v865 = vmul.f32 %v856, %v863
          %v866 = vsub.f32 %v846, %v864
          %v867 = vsub.f32 %v847, %v865
          %v868 = vmul.f32 %v866, %v866
          %v869 = vmul.f32 %v867, %v867
          %v870 = vsel %vm850, %v868, 0.0
          %871 = vadd.xlane.f32.xlu0 %v870
          %v872 = vpop.xlane.xlu0 %871
          %v873 = vsel %vm850, %v869, 0.0
          %874 = vadd.xlane.f32.xlu0 %v873
          %v875 = vpop.xlane.xlu0 %874
          %v876 = vmul.f32 %v872, %v863
          %v877 = vmul.f32 %v875, %v863
          %v878 = vadd.f32 %v876, 1e-12
          %v879 = vadd.f32 %v877, 1e-12
          %v880 = vrsqrt.pop %v878
          %v881 = vmul.f32 %v880, %v878
          %v882 = vmul.f32 %v881, %v880
          %v883 = vmul.f32 0.5, %v882
          %v884 = vsub.f32 1.5, %v883
          %v885 = vmul.f32 %v880, %v884
          %vm886 = vweird.f32 %v878
          %vm887 = vweird.f32 %v880
          %vm888 = vmor %vm886, %vm887
          %v889 = vsel %vm888, %v880, %v885
          %v890 = vrsqrt.pop %v879
          %v891 = vmul.f32 %v890, %v879
          %v892 = vmul.f32 %v891, %v890
          %v893 = vmul.f32 0.5, %v892
          %v894 = vsub.f32 1.5, %v893
          %v895 = vmul.f32 %v890, %v894
          %vm896 = vweird.f32 %v879
          %vm897 = vweird.f32 %v890
          %vm898 = vmor %vm896, %vm897
          %v899 = vsel %vm898, %v890, %v895
          %v900 = vmul.f32 %v866, %v889
          %v901 = vmul.f32 %v867, %v899
          %v903 = vperm.slane %v848, 0
          %v905 = vmul.f32 %v900, %v903
          %v906 = vmul.f32 %v901, %v903
          %v908 = vperm.slane %v849, 0
          %v910 = vadd.f32 %v905, %v908
          %v911 = vadd.f32 %v906, %v908
          %912 = vst.msk [vmem:[#allocation2] sm:$0xff] %vm850, %v910
          %913 = vst.msk [vmem:[#allocation2 + $0x8] sm:$0xff] %vm850, %v911
        $region100: #{bert_forward.1} parent=95 // pred_fallthru
          _
        %v914 = vld [vmem:[#allocation2] sm:$0xff]
        %v915 = vld [vmem:[#allocation2 + $0x8] sm:$0xff]
        %v916 = vpack.c.bf16 %v915, %v914
        %v917 = vld [vmem:[%s732] sm:$0xff]
        %v918 = vld [vmem:[%s732 + $0x8] sm:$0xff]
        %v919 = vld [vmem:[%s732 + $0x10] sm:$0xff]
        %v920 = vld [vmem:[%s732 + $0x18] sm:$0xff]
        %v921 = vld [vmem:[%s732 + $0x20] sm:$0xff]
        %v922 = vld [vmem:[%s732 + $0x28] sm:$0xff]
        %v923 = vld [vmem:[%s732 + $0x30] sm:$0xff]
        %v924 = vld [vmem:[%s732 + $0x38] sm:$0xff]
        %v925 = vld [vmem:[%s736] sm:$0x3]
        %v927 = vperm.slane %v925, 0
        %v928 = vperm.slane %v925, 1
        %v939 = vunpack.c.l.b16 %v917
        %v940 = vunpack.c.h.b16 %v917
        %v941 = vunpack.c.l.b16 %v918
        %v942 = vunpack.c.h.b16 %v918
        %v943 = vunpack.c.l.b16 %v919
        %v944 = vunpack.c.h.b16 %v919
        %v945 = vunpack.c.l.b16 %v920
        %v946 = vunpack.c.h.b16 %v920
        %v947 = vunpack.c.l.b16 %v921
        %v948 = vunpack.c.h.b16 %v921
        %v949 = vunpack.c.l.b16 %v922
        %v950 = vunpack.c.h.b16 %v922
        %v951 = vunpack.c.l.b16 %v923
        %v952 = vunpack.c.h.b16 %v923
        %v953 = vunpack.c.l.b16 %v924
        %v954 = vunpack.c.h.b16 %v924
        %v955 = vpack.c.b16 %v941, %v939
        %v956 = vpack.c.b16 %v942, %v940
        %v957 = vpack.c.b16 %v945, %v943
        %v958 = vpack.c.b16 %v946, %v944
        %v959 = vpack.c.b16 %v949, %v947
        %v960 = vpack.c.b16 %v950, %v948
        %v961 = vpack.c.b16 %v953, %v951
        %v962 = vpack.c.b16 %v954, %v952
        %vm971 = vcmask 523264
        %v973 = vsel %vm971, %v916, 0
        %975 = vmatpush.bf16.msra.mxu0 0
        %976 = vmatpush.bf16.msra.mxu0 0
        %977 = vmatpush.bf16.msra.mxu0 0
        %978 = vmatpush.bf16.msra.mxu0 0
        %979 = vmatpush.bf16.msra.mxu0 %v961
        %980 = vmatpush.bf16.msra.mxu0 %v959
        %981 = vmatpush.bf16.msra.mxu0 %v957
        %982 = vmatpush.bf16.msra.mxu0 %v955
        %983 = vmatmul.bf16.gmra.mxu0 %v973
        %v984 = vpop.f32.mrf.mxu0
        %v985 = vadd.f32 %v927, %v984
        %v986 = vpop.f32.mrf.mxu0
        %v987 = vadd.f32 %v927, %v986
        %988 = vdwg.mxu0
        %989 = vmatpush.bf16.msra.mxu0 0
        %990 = vmatpush.bf16.msra.mxu0 0
        %991 = vmatpush.bf16.msra.mxu0 0
        %992 = vmatpush.bf16.msra.mxu0 0
        %993 = vmatpush.bf16.msra.mxu0 %v962
        %994 = vmatpush.bf16.msra.mxu0 %v960
        %995 = vmatpush.bf16.msra.mxu0 %v958
        %996 = vmatpush.bf16.msra.mxu0 %v956
        %997 = vmatmul.bf16.gmra.mxu0 %v973
        %v998 = vpop.f32.mrf.mxu0
        %v999 = vadd.f32 %v928, %v998
        %v1000 = vpop.f32.mrf.mxu0
        %v1001 = vadd.f32 %v928, %v1000
        %1002 = vdwg.mxu0
        %v1003 = vmul.f32 %v985, 0.17677669
        %v1004 = vmul.f32 %v987, 0.17677669
        %v1005 = vpack.c.bf16 %v1003, %v1003
        %v1006 = vpack.c.bf16 %v1004, %v1004
        %v1007 = vpack.c.bf16 %v985, %v985
        %v1008 = vpack.c.bf16 %v987, %v987
        %v1009 = vpack.c.bf16 %v999, %v999
        %v1010 = vpack.c.bf16 %v1001, %v1001
        %v1011 = vld [vmem:[%s3] sm:$0x3]
        %v1012 = vsub.f32 1.0, %v1011
        %v1013 = vmul.f32 %v1012, -10000.0
        %v1015 = vrot.slane %v1013, 1
        %v1016 = vperm.slane %v1013, 0
        %v1017 = vperm.slane %v1015, 0
        %v1021 = vunpack.c.l.b16 %v1007
        %v1022 = vpack.c.b16 %v1021, %v1021
        %1023 = vrot.lane.b32.xlu0 %v1022, 64
        %v1024 = vpop.permute.xlu0 %1023
        %vm1025 = vcmask 261120
        %v1027 = vsel %vm1025, %v1005, 0
        %v1030 = vsel %vm1025, %v1024, 0
        %1032 = vmatpush.bf16.xpose.msra.mxu0 0
        %1033 = vmatpush.bf16.xpose.msra.mxu0 0
        %1034 = vmatpush.bf16.xpose.msra.mxu0 0
        %1035 = vmatpush.bf16.xpose.msra.mxu0 0
        %1036 = vmatpush.bf16.xpose.msra.mxu0 0
        %1037 = vmatpush.bf16.xpose.msra.mxu0 0
        %1038 = vmatpush.bf16.xpose.msra.mxu0 0
        %1039 = vmatpush.bf16.xpose.msra.mxu0 %v1030
        %1040 = vmatmul.bf16.gmra.mxu0 %v1027
        %v1041 = vpop.f32.mrf.mxu0
        %v1042 = vadd.f32 %v1016, %v1041
        %v1043 = vpop.f32.mrf.mxu0
        %1044 = vdwg.mxu0
        %v1046 = vunpack.c.l.b16 %v1008
        %v1047 = vpack.c.b16 %v1046, %v1046
        %1048 = vrot.lane.b32.xlu0 %v1047, 64
        %v1049 = vpop.permute.xlu0 %1048
        %v1051 = vsel %vm1025, %v1006, 0
        %v1054 = vsel %vm1025, %v1049, 0
        %1056 = vmatpush.bf16.xpose.msra.mxu0 0
        %1057 = vmatpush.bf16.xpose.msra.mxu0 0
        %1058 = vmatpush.bf16.xpose.msra.mxu0 0
        %1059 = vmatpush.bf16.xpose.msra.mxu0 0
        %1060 = vmatpush.bf16.xpose.msra.mxu0 0
        %1061 = vmatpush.bf16.xpose.msra.mxu0 0
        %1062 = vmatpush.bf16.xpose.msra.mxu0 0
        %1063 = vmatpush.bf16.xpose.msra.mxu0 %v1054
        %1064 = vmatmul.bf16.gmra.mxu0 %v1051
        %v1065 = vpop.f32.mrf.mxu0
        %v1066 = vadd.f32 %v1017, %v1065
        %v1067 = vpop.f32.mrf.mxu0
        %1068 = vdwg.mxu0
        %vm1069 = vcmask 64512
        %v1070 = vsel %vm1069, %v1042, -inf
        %1071 = vmax.xlane.f32.xlu0 %v1070
        %v1072 = vpop.xlane.xlu0 %1071
        %v1073 = vsel %vm1069, %v1066, -inf
        %1074 = vmax.xlane.f32.xlu0 %v1073
        %v1075 = vpop.xlane.xlu0 %1074
        %v1076 = vsub.f32 %v1042, %v1072
        %v1077 = vsub.f32 %v1066, %v1075
        %v1078 = vmul.f32 %v1076, 1.442695
        %v1079 = vpow.pop %v1078
        %v1080 = vmul.f32 %v1077, 1.442695
        %v1081 = vpow.pop %v1080
        %v1082 = vsel %vm1069, %v1079, 0.0
        %1083 = vadd.xlane.f32.xlu0 %v1082
        %v1084 = vpop.xlane.xlu0 %1083
        %v1085 = vsel %vm1069, %v1081, 0.0
        %1086 = vadd.xlane.f32.xlu0 %v1085
        %v1087 = vpop.xlane.xlu0 %1086
        %v1088 = vrcp.pop %v1084
        %v1089 = vrcp.pop %v1087
        %v1090 = vmul.f32 %v1079, %v1088
        %v1091 = vmul.f32 %v1081, %v1089
        %v1092 = vpack.c.bf16 %v1090, %v1090
        %v1093 = vpack.c.bf16 %v1091, %v1091
        %v1095 = vsel %vm1069, %v1092, 0
        %vm1097 = vcmask 1043456
        %v1099 = vsel %vm1097, %v1009, 0
        %1101 = vmatpush.bf16.msra.mxu0 0
        %1102 = vmatpush.bf16.msra.mxu0 0
        %1103 = vmatpush.bf16.msra.mxu0 0
        %1104 = vmatpush.bf16.msra.mxu0 0
        %1105 = vmatpush.bf16.msra.mxu0 0
        %1106 = vmatpush.bf16.msra.mxu0 0
        %1107 = vmatpush.bf16.msra.mxu0 0
        %1108 = vmatpush.bf16.msra.mxu0 %v1099
        %1109 = vmatmul.bf16.gmra.mxu0 %v1095
        %v1110 = vpop.f32.mrf.mxu0
        %v1111 = vadd.f32 0.0, %v1110
        %v1112 = vpop.f32.mrf.mxu0
        %1113 = vdwg.mxu0
        %v1115 = vsel %vm1069, %v1093, 0
        %v1118 = vsel %vm1097, %v1010, 0
        %1120 = vmatpush.bf16.msra.mxu0 0
        %1121 = vmatpush.bf16.msra.mxu0 0
        %1122 = vmatpush.bf16.msra.mxu0 0
        %1123 = vmatpush.bf16.msra.mxu0 0
        %1124 = vmatpush.bf16.msra.mxu0 0
        %1125 = vmatpush.bf16.msra.mxu0 0
        %1126 = vmatpush.bf16.msra.mxu0 0
        %1127 = vmatpush.bf16.msra.mxu0 %v1118
        %1128 = vmatmul.bf16.gmra.mxu0 %v1115
        %v1129 = vpop.f32.mrf.mxu0
        %v1130 = vadd.f32 0.0, %v1129
        %v1131 = vpop.f32.mrf.mxu0
        %1132 = vdwg.mxu0
        %v1134 = vunpack.c.l.b16 %v1005
        %v1135 = vpack.c.b16 %v1134, %v1134
        %1136 = vrot.lane.b32.xlu0 %v1135, 96
        %v1137 = vpop.permute.xlu0 %1136
        %1138 = vrot.lane.b32.xlu0 %v1022, 32
        %v1139 = vpop.permute.xlu0 %1138
        %v1141 = vsel %vm1025, %v1137, 0
        %v1144 = vsel %vm1025, %v1139, 0
        %1146 = vmatpush.bf16.xpose.msra.mxu0 0
        %1147 = vmatpush.bf16.xpose.msra.mxu0 0
        %1148 = vmatpush.bf16.xpose.msra.mxu0 0
        %1149 = vmatpush.bf16.xpose.msra.mxu0 0
        %1150 = vmatpush.bf16.xpose.msra.mxu0 0
        %1151 = vmatpush.bf16.xpose.msra.mxu0 0
        %1152 = vmatpush.bf16.xpose.msra.mxu0 0
        %1153 = vmatpush.bf16.xpose.msra.mxu0 %v1144
        %1154 = vmatmul.bf16.gmra.mxu0 %v1141
        %v1155 = vpop.f32.mrf.mxu0
        %v1156 = vadd.f32 %v1016, %v1155
        %v1157 = vpop.f32.mrf.mxu0
        %1158 = vdwg.mxu0
        %v1160 = vunpack.c.l.b16 %v1006
        %v1161 = vpack.c.b16 %v1160, %v1160
        %1162 = vrot.lane.b32.xlu0 %v1161, 96
        %v1163 = vpop.permute.xlu0 %1162
        %1164 = vrot.lane.b32.xlu0 %v1047, 32
        %v1165 = vpop.permute.xlu0 %1164
        %v1167 = vsel %vm1025, %v1163, 0
        %v1170 = vsel %vm1025, %v1165, 0
        %1172 = vmatpush.bf16.xpose.msra.mxu0 0
        %1173 = vmatpush.bf16.xpose.msra.mxu0 0
        %1174 = vmatpush.bf16.xpose.msra.mxu0 0
        %1175 = vmatpush.bf16.xpose.msra.mxu0 0
        %1176 = vmatpush.bf16.xpose.msra.mxu0 0
        %1177 = vmatpush.bf16.xpose.msra.mxu0 0
        %1178 = vmatpush.bf16.xpose.msra.mxu0 0
        %1179 = vmatpush.bf16.xpose.msra.mxu0 %v1170
        %1180 = vmatmul.bf16.gmra.mxu0 %v1167
        %v1181 = vpop.f32.mrf.mxu0
        %v1182 = vadd.f32 %v1017, %v1181
        %v1183 = vpop.f32.mrf.mxu0
        %1184 = vdwg.mxu0
        %v1185 = vsel %vm1069, %v1156, -inf
        %1186 = vmax.xlane.f32.xlu0 %v1185
        %v1187 = vpop.xlane.xlu0 %1186
        %v1188 = vsel %vm1069, %v1182, -inf
        %1189 = vmax.xlane.f32.xlu0 %v1188
        %v1190 = vpop.xlane.xlu0 %1189
        %v1191 = vsub.f32 %v1156, %v1187
        %v1192 = vsub.f32 %v1182, %v1190
        %v1193 = vmul.f32 %v1191, 1.442695
        %v1194 = vpow.pop %v1193
        %v1195 = vmul.f32 %v1192, 1.442695
        %v1196 = vpow.pop %v1195
        %v1197 = vsel %vm1069, %v1194, 0.0
        %1198 = vadd.xlane.f32.xlu0 %v1197
        %v1199 = vpop.xlane.xlu0 %1198
        %v1200 = vsel %vm1069, %v1196, 0.0
        %1201 = vadd.xlane.f32.xlu0 %v1200
        %v1202 = vpop.xlane.xlu0 %1201
        %v1203 = vrcp.pop %v1199
        %v1204 = vrcp.pop %v1202
        %v1205 = vmul.f32 %v1194, %v1203
        %v1206 = vmul.f32 %v1196, %v1204
        %v1207 = vpack.c.bf16 %v1205, %v1205
        %v1208 = vpack.c.bf16 %v1206, %v1206
        %v1210 = vunpack.c.l.b16 %v1009
        %v1211 = vpack.c.b16 %v1210, %v1210
        %1212 = vrot.lane.b32.xlu0 %v1211, 96
        %v1213 = vpop.permute.xlu0 %1212
        %v1215 = vsel %vm1069, %v1207, 0
        %v1218 = vsel %vm1097, %v1213, 0
        %1220 = vmatpush.bf16.msra.mxu0 0
        %1221 = vmatpush.bf16.msra.mxu0 0
        %1222 = vmatpush.bf16.msra.mxu0 0
        %1223 = vmatpush.bf16.msra.mxu0 0
        %1224 = vmatpush.bf16.msra.mxu0 0
        %1225 = vmatpush.bf16.msra.mxu0 0
        %1226 = vmatpush.bf16.msra.mxu0 0
        %1227 = vmatpush.bf16.msra.mxu0 %v1218
        %1228 = vmatmul.bf16.gmra.mxu0 %v1215
        %v1229 = vpop.f32.mrf.mxu0
        %v1230 = vadd.f32 0.0, %v1229
        %v1231 = vpop.f32.mrf.mxu0
        %1232 = vdwg.mxu0
        %v1234 = vunpack.c.l.b16 %v1010
        %v1235 = vpack.c.b16 %v1234, %v1234
        %1236 = vrot.lane.b32.xlu0 %v1235, 96
        %v1237 = vpop.permute.xlu0 %1236
        %v1239 = vsel %vm1069, %v1208, 0
        %v1242 = vsel %vm1097, %v1237, 0
        %1244 = vmatpush.bf16.msra.mxu0 0
        %1245 = vmatpush.bf16.msra.mxu0 0
        %1246 = vmatpush.bf16.msra.mxu0 0
        %1247 = vmatpush.bf16.msra.mxu0 0
        %1248 = vmatpush.bf16.msra.mxu0 0
        %1249 = vmatpush.bf16.msra.mxu0 0
        %1250 = vmatpush.bf16.msra.mxu0 0
        %1251 = vmatpush.bf16.msra.mxu0 %v1242
        %1252 = vmatmul.bf16.gmra.mxu0 %v1239
        %v1253 = vpop.f32.mrf.mxu0
        %v1254 = vadd.f32 0.0, %v1253
        %v1255 = vpop.f32.mrf.mxu0
        %1256 = vdwg.mxu0
        %1259 = vrot.lane.b32.xlu0 %v1230, 32
        %v1260 = vpop.permute.xlu0 %1259
        %1261 = vrot.lane.b32.xlu0 %v1254, 32
        %v1262 = vpop.permute.xlu0 %1261
        %v1265 = vsel %vm1025, %v1111, %v1260
        %v1266 = vsel %vm1025, %v1130, %v1262
        %v1267 = vpack.c.bf16 %v1266, %v1265
        %v1268 = vld [vmem:[%s741] sm:$0xf]
        %v1269 = vld [vmem:[%s741 + $0x4] sm:$0xf]
        %v1270 = vld [vmem:[%s741 + $0x8] sm:$0xf]
        %v1271 = vld [vmem:[%s741 + $0xc] sm:$0xf]
        %v1272 = vld [vmem:[%s741 + $0x10] sm:$0xf]
        %v1273 = vld [vmem:[%s741 + $0x14] sm:$0xf]
        %v1274 = vld [vmem:[%s741 + $0x18] sm:$0xf]
        %v1275 = vld [vmem:[%s741 + $0x1c] sm:$0xf]
        %v1276 = vld [vmem:[%s744] sm:$0x1]
        %v1278 = vperm.slane %v1276, 0
        %v1288 = vunpack.c.l.b16 %v1268
        %v1289 = vunpack.c.l.b16 %v1269
        %v1290 = vunpack.c.l.b16 %v1270
        %v1291 = vunpack.c.l.b16 %v1271
        %v1292 = vunpack.c.l.b16 %v1272
        %v1293 = vunpack.c.l.b16 %v1273
        %v1294 = vunpack.c.l.b16 %v1274
        %v1295 = vunpack.c.l.b16 %v1275
        %v1296 = vpack.c.b16 %v1289, %v1288
        %v1297 = vpack.c.b16 %v1291, %v1290
        %v1298 = vpack.c.b16 %v1293, %v1292
        %v1299 = vpack.c.b16 %v1295, %v1294
        %v1305 = vsel %vm971, %v1267, 0
        %1307 = vmatpush.bf16.msra.mxu0 0
        %1308 = vmatpush.bf16.msra.mxu0 0
        %1309 = vmatpush.bf16.msra.mxu0 0
        %1310 = vmatpush.bf16.msra.mxu0 0
        %1311 = vmatpush.bf16.msra.mxu0 %v1299
        %1312 = vmatpush.bf16.msra.mxu0 %v1298
        %1313 = vmatpush.bf16.msra.mxu0 %v1297
        %1314 = vmatpush.bf16.msra.mxu0 %v1296
        %1315 = vmatmul.bf16.gmra.mxu0 %v1305
        %v1316 = vpop.f32.mrf.mxu0
        %v1317 = vadd.f32 %v1278, %v1316
        %v1318 = vpop.f32.mrf.mxu0
        %v1319 = vadd.f32 %v1278, %v1318
        %1320 = vdwg.mxu0
        %v1321 = vadd.f32 %v1317, %v914
        %v1322 = vadd.f32 %v1319, %v915
        %v1323 = vld [vmem:[%s747] sm:$0x1]
        %v1324 = vld [vmem:[%s750] sm:$0x1]
        %v1325 = vsel %vm971, %v1321, 0.0
        %1326 = vadd.xlane.f32.xlu0 %v1325
        %v1327 = vpop.xlane.xlu0 %1326
        %v1328 = vsel %vm971, %v1322, 0.0
        %1329 = vadd.xlane.f32.xlu0 %v1328
        %v1330 = vpop.xlane.xlu0 %1329
        %v1331 = vrcp.pop 64.0
        %v1332 = vmul.f32 64.0, %v1331
        %v1333 = vsub.f32 1.0, %v1332
        %v1334 = vmul.f32 %v1331, %v1333
        %v1335 = vadd.f32 %v1331, %v1334
        %vm1336 = vweird.f32 %v1331
        %v1337 = vsel %vm1336, %v1331, %v1335
        %v1338 = vmul.f32 %v1327, %v1337
        %v1339 = vmul.f32 %v1330, %v1337
        %v1340 = vsub.f32 %v1321, %v1338
        %v1341 = vsub.f32 %v1322, %v1339
        %v1342 = vmul.f32 %v1340, %v1340
        %v1343 = vmul.f32 %v1341, %v1341
        %v1344 = vsel %vm971, %v1342, 0.0
        %1345 = vadd.xlane.f32.xlu0 %v1344
        %v1346 = vpop.xlane.xlu0 %1345
        %v1347 = vsel %vm971, %v1343, 0.0
        %1348 = vadd.xlane.f32.xlu0 %v1347
        %v1349 = vpop.xlane.xlu0 %1348
        %v1350 = vmul.f32 %v1346, %v1337
        %v1351 = vmul.f32 %v1349, %v1337
        %v1352 = vadd.f32 %v1350, 1e-12
        %v1353 = vadd.f32 %v1351, 1e-12
        %v1354 = vrsqrt.pop %v1352
        %v1355 = vmul.f32 %v1354, %v1352
        %v1356 = vmul.f32 %v1355, %v1354
        %v1357 = vmul.f32 0.5, %v1356
        %v1358 = vsub.f32 1.5, %v1357
        %v1359 = vmul.f32 %v1354, %v1358
        %vm1360 = vweird.f32 %v1352
        %vm1361 = vweird.f32 %v1354
        %vm1362 = vmor %vm1360, %vm1361
        %v1363 = vsel %vm1362, %v1354, %v1359
        %v1364 = vrsqrt.pop %v1353
        %v1365 = vmul.f32 %v1364, %v1353
        %v1366 = vmul.f32 %v1365, %v1364
        %v1367 = vmul.f32 0.5, %v1366
        %v1368 = vsub.f32 1.5, %v1367
        %v1369 = vmul.f32 %v1364, %v1368
        %vm1370 = vweird.f32 %v1353
        %vm1371 = vweird.f32 %v1364
        %vm1372 = vmor %vm1370, %vm1371
        %v1373 = vsel %vm1372, %v1364, %v1369
        %v1374 = vmul.f32 %v1340, %v1363
        %v1375 = vmul.f32 %v1341, %v1373
        %v1377 = vperm.slane %v1323, 0
        %v1379 = vmul.f32 %v1374, %v1377
        %v1380 = vmul.f32 %v1375, %v1377
        %v1382 = vperm.slane %v1324, 0
        %v1384 = vadd.f32 %v1379, %v1382
        %v1385 = vadd.f32 %v1380, %v1382
        %v1386 = vpack.c.bf16 %v1385, %v1384
        %v1387 = vld [vmem:[%s755] sm:$0xf]
        %v1388 = vld [vmem:[%s755 + $0x4] sm:$0xf]
        %v1389 = vld [vmem:[%s755 + $0x8] sm:$0xf]
        %v1390 = vld [vmem:[%s755 + $0xc] sm:$0xf]
        %v1391 = vld [vmem:[%s755 + $0x10] sm:$0xf]
        %v1392 = vld [vmem:[%s755 + $0x14] sm:$0xf]
        %v1393 = vld [vmem:[%s755 + $0x18] sm:$0xf]
        %v1394 = vld [vmem:[%s755 + $0x1c] sm:$0xf]
        %v1395 = vld [vmem:[%s758] sm:$0x1]
        %v1397 = vperm.slane %v1395, 0
        %v1407 = vunpack.c.l.b16 %v1387
        %v1408 = vunpack.c.l.b16 %v1388
        %v1409 = vunpack.c.l.b16 %v1389
        %v1410 = vunpack.c.l.b16 %v1390
        %v1411 = vunpack.c.l.b16 %v1391
        %v1412 = vunpack.c.l.b16 %v1392
        %v1413 = vunpack.c.l.b16 %v1393
        %v1414 = vunpack.c.l.b16 %v1394
        %v1415 = vpack.c.b16 %v1408, %v1407
        %v1416 = vpack.c.b16 %v1410, %v1409
        %v1417 = vpack.c.b16 %v1412, %v1411
        %v1418 = vpack.c.b16 %v1414, %v1413
        %v1424 = vsel %vm971, %v1386, 0
        %1426 = vmatpush.bf16.msra.mxu0 0
        %1427 = vmatpush.bf16.msra.mxu0 0
        %1428 = vmatpush.bf16.msra.mxu0 0
        %1429 = vmatpush.bf16.msra.mxu0 0
        %1430 = vmatpush.bf16.msra.mxu0 %v1418
        %1431 = vmatpush.bf16.msra.mxu0 %v1417
        %1432 = vmatpush.bf16.msra.mxu0 %v1416
        %1433 = vmatpush.bf16.msra.mxu0 %v1415
        %1434 = vmatmul.bf16.gmra.mxu0 %v1424
        %v1435 = vpop.f32.mrf.mxu0
        %v1436 = vadd.f32 %v1397, %v1435
        %v1437 = vpop.f32.mrf.mxu0
        %v1438 = vadd.f32 %v1397, %v1437
        %1439 = vdwg.mxu0
        %v1440 = vmul.f32 %v1436, %v1436
        %v1441 = vmul.f32 %v1438, %v1438
        %v1442 = vmul.f32 %v1436, %v1440
        %v1443 = vmul.f32 %v1438, %v1441
        %v1444 = vmul.f32 %v1442, 0.044715
        %v1445 = vmul.f32 %v1443, 0.044715
        %v1446 = vadd.f32 %v1436, %v1444
        %v1447 = vadd.f32 %v1438, %v1445
        %v1448 = vmul.f32 %v1446, 0.7978846
        %v1449 = vmul.f32 %v1447, 0.7978846
        %v1450 = vtanh.pop %v1448
        %v1451 = vtanh.pop %v1449
        %v1452 = vadd.f32 %v1450, 1.0
        %v1453 = vadd.f32 %v1451, 1.0
        %v1454 = vmul.f32 %v1452, 0.5
        %v1455 = vmul.f32 %v1453, 0.5
        %v1456 = vmul.f32 %v1436, %v1454
        %v1457 = vmul.f32 %v1438, %v1455
        %v1458 = vpack.c.bf16 %v1457, %v1456
        %v1459 = vld [vmem:[%s763] sm:$0xf]
        %v1460 = vld [vmem:[%s763 + $0x4] sm:$0xf]
        %v1461 = vld [vmem:[%s763 + $0x8] sm:$0xf]
        %v1462 = vld [vmem:[%s763 + $0xc] sm:$0xf]
        %v1463 = vld [vmem:[%s763 + $0x10] sm:$0xf]
        %v1464 = vld [vmem:[%s763 + $0x14] sm:$0xf]
        %v1465 = vld [vmem:[%s763 + $0x18] sm:$0xf]
        %v1466 = vld [vmem:[%s763 + $0x1c] sm:$0xf]
        %v1467 = vld [vmem:[%s763 + $0x20] sm:$0xf]
        %v1468 = vld [vmem:[%s763 + $0x24] sm:$0xf]
        %v1469 = vld [vmem:[%s763 + $0x28] sm:$0xf]
        %v1470 = vld [vmem:[%s763 + $0x2c] sm:$0xf]
        %v1471 = vld [vmem:[%s763 + $0x30] sm:$0xf]
        %v1472 = vld [vmem:[%s763 + $0x34] sm:$0xf]
        %v1473 = vld [vmem:[%s763 + $0x38] sm:$0xf]
        %v1474 = vld [vmem:[%s763 + $0x3c] sm:$0xf]
        %v1475 = vld [vmem:[%s766] sm:$0x1]
        %v1477 = vperm.slane %v1475, 0
        %v1495 = vunpack.c.l.b16 %v1459
        %v1496 = vunpack.c.l.b16 %v1460
        %v1497 = vunpack.c.l.b16 %v1461
        %v1498 = vunpack.c.l.b16 %v1462
        %v1499 = vunpack.c.l.b16 %v1463
        %v1500 = vunpack.c.l.b16 %v1464
        %v1501 = vunpack.c.l.b16 %v1465
        %v1502 = vunpack.c.l.b16 %v1466
        %v1503 = vunpack.c.l.b16 %v1467
        %v1504 = vunpack.c.l.b16 %v1468
        %v1505 = vunpack.c.l.b16 %v1469
        %v1506 = vunpack.c.l.b16 %v1470
        %v1507 = vunpack.c.l.b16 %v1471
        %v1508 = vunpack.c.l.b16 %v1472
        %v1509 = vunpack.c.l.b16 %v1473
        %v1510 = vunpack.c.l.b16 %v1474
        %v1511 = vpack.c.b16 %v1496, %v1495
        %v1512 = vpack.c.b16 %v1498, %v1497
        %v1513 = vpack.c.b16 %v1500, %v1499
        %v1514 = vpack.c.b16 %v1502, %v1501
        %v1515 = vpack.c.b16 %v1504, %v1503
        %v1516 = vpack.c.b16 %v1506, %v1505
        %v1517 = vpack.c.b16 %v1508, %v1507
        %v1518 = vpack.c.b16 %v1510, %v1509
        %1527 = vmatpush.bf16.msra.mxu0 %v1518
        %1528 = vmatpush.bf16.msra.mxu0 %v1517
        %1529 = vmatpush.bf16.msra.mxu0 %v1516
        %1530 = vmatpush.bf16.msra.mxu0 %v1515
        %1531 = vmatpush.bf16.msra.mxu0 %v1514
        %1532 = vmatpush.bf16.msra.mxu0 %v1513
        %1533 = vmatpush.bf16.msra.mxu0 %v1512
        %1534 = vmatpush.bf16.msra.mxu0 %v1511
        %1535 = vmatmul.bf16.gmra.mxu0 %v1458
        %v1536 = vpop.f32.mrf.mxu0
        %v1537 = vadd.f32 %v1477, %v1536
        %v1538 = vpop.f32.mrf.mxu0
        %v1539 = vadd.f32 %v1477, %v1538
        %1540 = vdwg.mxu0
        %v1541 = vadd.f32 %v1537, %v1384
        %v1542 = vadd.f32 %v1539, %v1385
        %v1543 = vld [vmem:[%s769] sm:$0x1]
        %v1544 = vld [vmem:[%s772] sm:$0x1]
        %v1545 = vsel %vm971, %v1541, 0.0
        %1546 = vadd.xlane.f32.xlu0 %v1545
        %v1547 = vpop.xlane.xlu0 %1546
        %v1548 = vsel %vm971, %v1542, 0.0
        %1549 = vadd.xlane.f32.xlu0 %v1548
        %v1550 = vpop.xlane.xlu0 %1549
        %v1551 = vmul.f32 %v1547, %v1337
        %v1552 = vmul.f32 %v1550, %v1337
        %v1553 = vsub.f32 %v1541, %v1551
        %v1554 = vsub.f32 %v1542, %v1552
        %v1555 = vmul.f32 %v1553, %v1553
        %v1556 = vmul.f32 %v1554, %v1554
        %v1557 = vsel %vm971, %v1555, 0.0
        %1558 = vadd.xlane.f32.xlu0 %v1557
        %v1559 = vpop.xlane.xlu0 %1558
        %v1560 = vsel %vm971, %v1556, 0.0
        %1561 = vadd.xlane.f32.xlu0 %v1560
        %v1562 = vpop.xlane.xlu0 %1561
        %v1563 = vmul.f32 %v1559, %v1337
        %v1564 = vmul.f32 %v1562, %v1337
        %v1565 = vadd.f32 %v1563, 1e-12
        %v1566 = vadd.f32 %v1564, 1e-12
        %v1567 = vrsqrt.pop %v1565
        %v1568 = vmul.f32 %v1567, %v1565
        %v1569 = vmul.f32 %v1568, %v1567
        %v1570 = vmul.f32 0.5, %v1569
        %v1571 = vsub.f32 1.5, %v1570
        %v1572 = vmul.f32 %v1567, %v1571
        %vm1573 = vweird.f32 %v1565
        %vm1574 = vweird.f32 %v1567
        %vm1575 = vmor %vm1573, %vm1574
        %v1576 = vsel %vm1575, %v1567, %v1572
        %v1577 = vrsqrt.pop %v1566
        %v1578 = vmul.f32 %v1577, %v1566
        %v1579 = vmul.f32 %v1578, %v1577
        %v1580 = vmul.f32 0.5, %v1579
        %v1581 = vsub.f32 1.5, %v1580
        %v1582 = vmul.f32 %v1577, %v1581
        %vm1583 = vweird.f32 %v1566
        %vm1584 = vweird.f32 %v1577
        %vm1585 = vmor %vm1583, %vm1584
        %v1586 = vsel %vm1585, %v1577, %v1582
        %v1587 = vmul.f32 %v1553, %v1576
        %v1588 = vmul.f32 %v1554, %v1586
        %v1590 = vperm.slane %v1543, 0
        %v1592 = vmul.f32 %v1587, %v1590
        %v1593 = vmul.f32 %v1588, %v1590
        %v1595 = vperm.slane %v1544, 0
        %v1597 = vadd.f32 %v1592, %v1595
        %v1598 = vadd.f32 %v1593, %v1595
        %1599 = vst.msk [vmem:[#allocation2] sm:$0xff] %vm971, %v1597
        %1600 = vst.msk [vmem:[#allocation2 + $0x8] sm:$0xff] %vm971, %v1598
        %p1601 = scmp.eq.s32.totalorder %s40, 1
        // Predicated region
        $region101: #{bert_forward.1} parent=95 // pred_check
          %p1602 = pneg %p1601
        $region102: #{bert_forward.1} parent=95 // pred_check_branch
          %1604 = sbr.rel (%p1602) target = $region104
        $region103: #{bert_forward.1} parent=95 // pred_region
          %v1605 = vpack.c.bf16 %v1597, %v1597
          %v1606 = vpack.c.bf16 %v1598, %v1598
          %v1607 = vld [vmem:[%s18] sm:$0xf]
          %v1608 = vld [vmem:[%s18 + $0x4] sm:$0xf]
          %v1609 = vld [vmem:[%s18 + $0x8] sm:$0xf]
          %v1610 = vld [vmem:[%s18 + $0xc] sm:$0xf]
          %v1611 = vld [vmem:[%s18 + $0x10] sm:$0xf]
          %v1612 = vld [vmem:[%s18 + $0x14] sm:$0xf]
          %v1613 = vld [vmem:[%s18 + $0x18] sm:$0xf]
          %v1614 = vld [vmem:[%s18 + $0x1c] sm:$0xf]
          %v1615 = vld [vmem:[%s19] sm:$0x1]
          %v1617 = vperm.slane %v1615, 0
          %v1621 = vunpack.c.l.b16 %v1605
          %v1622 = vunpack.c.l.b16 %v1606
          %v1623 = vrot.slane %v1622, 7
          %vm1624 = vcmask 1041409
          %v1625 = vsel %vm1624, %v1623, %v1621
          %v1626 = vpack.c.b16 %v1625, %v1625
          %v1635 = vunpack.c.l.b16 %v1607
          %v1636 = vunpack.c.l.b16 %v1608
          %v1637 = vunpack.c.l.b16 %v1609
          %v1638 = vunpack.c.l.b16 %v1610
          %v1639 = vunpack.c.l.b16 %v1611
          %v1640 = vunpack.c.l.b16 %v1612
          %v1641 = vunpack.c.l.b16 %v1613
          %v1642 = vunpack.c.l.b16 %v1614
          %v1643 = vpack.c.b16 %v1636, %v1635
          %v1644 = vpack.c.b16 %v1638, %v1637
          %v1645 = vpack.c.b16 %v1640, %v1639
          %v1646 = vpack.c.b16 %v1642, %v1641
          %v1652 = vsel %vm971, %v1626, 0
          %1654 = vmatpush.bf16.msra.mxu0 0
          %1655 = vmatpush.bf16.msra.mxu0 0
          %1656 = vmatpush.bf16.msra.mxu0 0
          %1657 = vmatpush.bf16.msra.mxu0 0
          %1658 = vmatpush.bf16.msra.mxu0 %v1646
          %1659 = vmatpush.bf16.msra.mxu0 %v1645
          %1660 = vmatpush.bf16.msra.mxu0 %v1644
          %1661 = vmatpush.bf16.msra.mxu0 %v1643
          %1662 = vmatmul.bf16.gmra.mxu0 %v1652
          %v1663 = vpop.f32.mrf.mxu0
          %v1664 = vadd.f32 %v1617, %v1663
          %v1665 = vpop.f32.mrf.mxu0
          %1666 = vdwg.mxu0
          %v1667 = vtanh.pop %v1664
          %vm1668 = vcmask 517120
          %1669 = vst.msk [vmem:[#allocation5] sm:$0x3] %vm1668, %v1667
        $region104: #{bert_forward.1} parent=95 // pred_fallthru
          _
        // Predicated region
        $region105: #{bert_forward.1} parent=95 // pred_check
          %p1670 = pneg %p512
        $region106: #{bert_forward.1} parent=95 // pred_check_branch
          %1672 = sbr.rel (%p1670) target = $region108
        $region107: #{bert_forward.1} parent=95 // pred_region
          %1674 = vsyncadd [#allocation6], 0
          %s1676 = sshll.u32 [#allocation5], 4
          %s1677 = int_to_ptr.vmem [resolvable:$true] %s1676
          %s1678 = sshll.u32 %s20, 4
          %s1679 = int_to_ptr.hbm [resolvable:$true] %s1678
          %1681 = dma.vmem_to_hbm [thread:$0]  %s1677, 32, %s1679, [#allocation6]
        $region108: #{bert_forward.1} parent=95 // pred_fallthru
          _
        // Predicated region
        $region109: #{bert_forward.1} parent=95 // pred_check
          %p1682 = pneg %p512
        $region110: #{bert_forward.1} parent=95 // pred_check_branch
          %1684 = sbr.rel (%p1682) target = $region112
        $region111: #{bert_forward.1} parent=95 // pred_region
          %1686 = dma.done [#allocation6], 32
        $region112: #{bert_forward.1} parent=95 // pred_fallthru
          _
      $region96: #{bert_forward.1} parent=5 // pred_fallthru
        _
      %p1687 = scmp.le.s32.totalorder 2, %s35
      // Predicated region
      $region113: #{bert_forward.1} parent=5 // pred_check
        %p1688 = pneg %p1687
      $region114: #{bert_forward.1} parent=5 // pred_check_branch
        %1690 = sbr.rel (%p1688) target = $region116
      $region115: #{bert_forward.1} parent=5 // pred_region
        %s1691 = ssub.s32 %s35, 2
      $region116: #{bert_forward.1} parent=5 // pred_fallthru
        _
    $region6: #{bert_forward.1} parent=1 // loop_footer
      %s39 = sadd.s32 1, %s35
    $region7: #{bert_forward.1} parent=1 // loop_footer_branch
      %34 = sbr.rel target = $region3
    $region8: #{bert_forward.1} parent=1 // loop_exit
      _
    %1692 = vsyncpa [#allocation6], 1
    %s1693 = scalar_lea.sflag [#allocation6], 1
    %1694 = vsyncpa %s1693, 1

</llo_original>
